<compile_context>
chip_gen: v7x
topology: tpu7x:2x2x1
jax: 0.10.0
libtpu: 0.0.40
codegen_flags: <defaults>
</compile_context>

<pallas_src>
import math
import functools

import jax
import jax.numpy as jnp
from jax.experimental import pallas as pl
from jax.experimental.pallas import tpu as pltpu


# ---------------------------------------------------------------------------
# Fused encoder-layer kernel: one grid step = one (batch, query-tile) block.
# ---------------------------------------------------------------------------
def encoder_layer_kernel(q_ref, kh_ref, vh_ref,
                         wq_ref, bq_ref,
                         ln1_g_ref, ln1_b_ref,
                         w1_ref, b1_ref, w2_ref, b2_ref,
                         ln2_g_ref, ln2_b_ref,
                         out_ref, score_ref, *, head, eps=1e-5):
    f32 = jnp.float32
    bf16 = jnp.bfloat16

    q = q_ref[...]                                   # (tq, D) f32 (kept for residual)
    tq, D = q.shape
    dk = D // head

    # ---- Q projection: bf16 operands, f32 accumulate. 1/sqrt(dk) pre-folded.
    qp = jnp.dot(q.astype(bf16), wq_ref[...], preferred_element_type=f32) + bq_ref[...]
    qh = qp.reshape(tq, head, dk).astype(bf16)       # (tq, H, dk) -- no explicit transpose

    kh = kh_ref[...]                                 # (H, S, dk) bf16, pre-projected outside
    vh = vh_ref[...]                                 # (H, S, dk) bf16

    # ---- attention scores, all heads in one dot_general
    s = jnp.einsum('qhd,hkd->hqk', qh, kh, preferred_element_type=f32)   # (H, tq, S) f32

    # ---- softmax in f32; reassign so the compiler can reuse the (H,tq,S) buffer.
    s = jnp.exp(s - jnp.max(s, axis=-1, keepdims=True))
    p = s / jnp.sum(s, axis=-1, keepdims=True)       # exact normalization for stored scores
    score_ref[...] = p.astype(score_ref.dtype)       # bf16 store halves HBM writeback

    # ---- PV; result directly in (tq, H, dk) so reshape == torch.cat over heads.
    o = jnp.einsum('hqk,hkd->qhd', p.astype(bf16), vh, preferred_element_type=f32)
    attn = o.reshape(tq, D)

    # ---- residual + LayerNorm 1 (f32)
    x = q + attn
    m1 = jnp.mean(x, axis=-1, keepdims=True)
    v1 = jnp.mean((x - m1) ** 2, axis=-1, keepdims=True)
    x1 = (x - m1) * jax.lax.rsqrt(v1 + eps) * ln1_g_ref[...] + ln1_b_ref[...]

    # ---- FeedForward fused in the same kernel (x1 never leaves VMEM).
    # Dropout is identity in eval mode.
    h1 = jnp.maximum(
        jnp.dot(x1.astype(bf16), w1_ref[...], preferred_element_type=f32) + b1_ref[...],
        0.0)
    y = jnp.dot(h1.astype(bf16), w2_ref[...], preferred_element_type=f32) + b2_ref[...]

    # ---- residual + LayerNorm 2 (f32)
    z = y + x1
    m2 = jnp.mean(z, axis=-1, keepdims=True)
    v2 = jnp.mean((z - m2) ** 2, axis=-1, keepdims=True)
    out_ref[...] = ((z - m2) * jax.lax.rsqrt(v2 + eps) * ln2_g_ref[...]
                    + ln2_b_ref[...]).astype(out_ref.dtype)


# ---------------------------------------------------------------------------
# Wrapper
# ---------------------------------------------------------------------------
def _vmem_limit_bytes():
    # Raise the scoped VMEM limit above the conservative defaults (16/32 MiB),
    # but stay well under the chip's physical capacity (64 MiB on v7x).
    try:
        cap = pltpu.get_tpu_info().vmem_capacity_bytes
    except Exception:
        cap = 64 * 1024 * 1024
    return min(int(cap * 0.85), 100 * 1024 * 1024)


def encoder_layer(q, k, v, params, *, head, q_tile=128, score_dtype=jnp.bfloat16):
    B, S, D = q.shape
    Sk = k.shape[1]
    F = params["w1"].shape[1]
    dk = D // head
    scale = 1.0 / math.sqrt(dk)

    tq = min(q_tile, S)
    assert S % tq == 0, "sequence length must be divisible by the query tile"
    nq = S // tq

    bf16 = jnp.bfloat16
    f32 = jnp.float32

    # K/V projections are query-tile invariant: do them once per batch with plain
    # XLA (f32 accumulate) and hand the kernel K/V already split into heads, bf16.
    kp = jnp.einsum('bsd,de->bse', k, params["wk"]) + params["bk"]
    vp = jnp.einsum('bsd,de->bse', v, params["wv"]) + params["bv"]
    kh = kp.reshape(B, Sk, head, dk).transpose(0, 2, 1, 3).astype(bf16)   # (B,H,Sk,dk)
    vh = vp.reshape(B, Sk, head, dk).transpose(0, 2, 1, 3).astype(bf16)

    # Fold the 1/sqrt(dk) score scale into the Q projection (free preprocessing);
    # cast matmul weights to bf16 once, keep biases / LN params in f32.
    wq = (params["wq"] * scale).astype(bf16)
    bq = (params["bq"] * scale).astype(f32)
    w1 = params["w1"].astype(bf16)
    w2 = params["w2"].astype(bf16)

    q_spec = pl.BlockSpec((None, tq, D), lambda b, i: (b, i, 0))
    kv_spec = pl.BlockSpec((None, head, Sk, dk), lambda b, i: (b, 0, 0, 0))
    score_spec = pl.BlockSpec((None, head, tq, Sk), lambda b, i: (b, 0, i, 0))
    const = lambda shape: pl.BlockSpec(shape, lambda b, i: (0,) * len(shape))
    # NOTE: the constant-index-map weight blocks are not re-fetched across grid
    # steps; at very large D/F they could additionally be single-buffered via
    # pipeline_mode=pl.Buffered(1) to save VMEM.

    out, score = pl.pallas_call(
        functools.partial(encoder_layer_kernel, head=head),
        out_shape=(jax.ShapeDtypeStruct((B, S, D), f32),
                   jax.ShapeDtypeStruct((B, head, S, Sk), score_dtype)),
        grid=(B, nq),
        in_specs=[q_spec, kv_spec, kv_spec,
                  const((D, D)), const((1, D)),
                  const((1, D)), const((1, D)),
                  const((D, F)), const((1, F)),
                  const((F, D)), const((1, D)),
                  const((1, D)), const((1, D))],
        out_specs=(q_spec, score_spec),
        compiler_params=pltpu.CompilerParams(
            dimension_semantics=("parallel", "parallel"),
            vmem_limit_bytes=_vmem_limit_bytes()),
    )(q, kh, vh,
      wq, bq,
      params["ln1_g"], params["ln1_b"],
      w1, params["b1"], w2, params["b2"],
      params["ln2_g"], params["ln2_b"])

    # TODO(synk): mask=None path only; adding a mask requires -inf handling
    # (fully-masked rows) in the softmax.
    return out, score


# ---------------------------------------------------------------------------
# Pure-JAX f32 reference (same math as the PyTorch module) for correctness.
# ---------------------------------------------------------------------------
def encoder_layer_ref(q, k, v, p, *, head, eps=1e-5):
    def ln(x, g, b):
        m = jnp.mean(x, -1, keepdims=True)
        var = jnp.mean((x - m) ** 2, -1, keepdims=True)
        return (x - m) / jnp.sqrt(var + eps) * g + b

    B, S, D = q.shape
    dk = D // head
    qp = q @ p["wq"] + p["bq"]
    kp = k @ p["wk"] + p["bk"]
    vp = v @ p["wv"] + p["bv"]
    qh = qp.reshape(B, S, head, dk).transpose(0, 2, 1, 3)
    kh = kp.reshape(B, S, head, dk).transpose(0, 2, 1, 3)
    vh = vp.reshape(B, S, head, dk).transpose(0, 2, 1, 3)
    s = jnp.einsum('bhqd,bhkd->bhqk', qh, kh) / math.sqrt(dk)
    att = jax.nn.softmax(s, axis=-1)
    o = jnp.einsum('bhqk,bhkd->bhqd', att, vh)
    o = o.transpose(0, 2, 1, 3).reshape(B, S, D)
    x = ln(q + o, p["ln1_g"], p["ln1_b"])
    h = jnp.maximum(x @ p["w1"] + p["b1"], 0.0)
    y = h @ p["w2"] + p["b2"]
    return ln(y + x, p["ln2_g"], p["ln2_b"]), att


if __name__ == "__main__":
    B, S, D, H, F = 2, 8, 32, 4, 64

    key = jax.random.PRNGKey(0)
    keys = jax.random.split(key, 12)

    def init(k, shape, scale=0.1):
        return jax.random.normal(k, shape, jnp.float32) * scale

    params = {
        "wq": init(keys[0], (D, D)), "bq": init(keys[1], (1, D)),
        "wk": init(keys[2], (D, D)), "bk": init(keys[3], (1, D)),
        "wv": init(keys[4], (D, D)), "bv": init(keys[5], (1, D)),
        "ln1_g": jnp.ones((1, D), jnp.float32), "ln1_b": jnp.zeros((1, D), jnp.float32),
        "w1": init(keys[6], (D, F)), "b1": init(keys[7], (1, F)),
        "w2": init(keys[8], (F, D)), "b2": init(keys[9], (1, D)),
        "ln2_g": jnp.ones((1, D), jnp.float32), "ln2_b": jnp.zeros((1, D), jnp.float32),
    }

    q = jax.random.normal(keys[10], (B, S, D), jnp.float32)
    k = q
    v = q  # EncoderLayer is typically used for self-attention (q = k = v)

    fn = jax.jit(functools.partial(encoder_layer, head=H))
    out, score = fn(q, k, v, params)
    jax.block_until_ready((out, score))

    out_ref, score_ref = encoder_layer_ref(q, k, v, params, head=H)
    # bf16 matmul operands and bf16 stored scores vs f32 reference -> modest tolerances.
    assert out.shape == (B, S, D) and score.shape == (B, H, S, S)
    assert jnp.allclose(score.astype(jnp.float32), score_ref, rtol=3e-2, atol=1e-2), \
        "score mismatch"
    assert jnp.allclose(out, out_ref, rtol=5e-2, atol=5e-2), "output mismatch"

    print("KERNEL_OK")
</pallas_src>

<mosaic_0001>
module attributes {stable_mosaic.version = 11 : i64} {
  func.func @encoder_layer_kernel(%arg0: i32, %arg1: i32, %arg2: memref<1x8x32xf32, #tpu.memory_space<vmem>>, %arg3: memref<1x4x8x8xbf16, #tpu.memory_space<vmem>>, %arg4: memref<1x4x8x8xbf16, #tpu.memory_space<vmem>>, %arg5: memref<32x32xbf16, #tpu.memory_space<vmem>>, %arg6: memref<1x32xf32, #tpu.memory_space<vmem>>, %arg7: memref<1x32xf32, #tpu.memory_space<vmem>>, %arg8: memref<1x32xf32, #tpu.memory_space<vmem>>, %arg9: memref<32x64xbf16, #tpu.memory_space<vmem>>, %arg10: memref<1x64xf32, #tpu.memory_space<vmem>>, %arg11: memref<64x32xbf16, #tpu.memory_space<vmem>>, %arg12: memref<1x32xf32, #tpu.memory_space<vmem>>, %arg13: memref<1x32xf32, #tpu.memory_space<vmem>>, %arg14: memref<1x32xf32, #tpu.memory_space<vmem>>, %arg15: memref<1x8x32xf32, #tpu.memory_space<vmem>>, %arg16: memref<1x4x8x8xbf16, #tpu.memory_space<vmem>>) attributes {dimension_semantics = [#tpu.dimension_semantics<parallel>, #tpu.dimension_semantics<parallel>], iteration_bounds = array<i64: 2, 1>, scalar_prefetch = 0 : i64, scratch_operands = 0 : i64, tpu.core_type = #tpu.core_type<tc>, window_params = [{transform_indices = @transform_0, window_bounds = array<i64: 1, 8, 32>}, {transform_indices = @transform_1, window_bounds = array<i64: 1, 4, 8, 8>}, {transform_indices = @transform_2, window_bounds = array<i64: 1, 4, 8, 8>}, {pipeline_mode = #tpu.pipeline_mode<synchronous>, transform_indices = @transform_3, window_bounds = array<i64: 32, 32>}, {pipeline_mode = #tpu.pipeline_mode<synchronous>, transform_indices = @transform_4, window_bounds = array<i64: 1, 32>}, {pipeline_mode = #tpu.pipeline_mode<synchronous>, transform_indices = @transform_5, window_bounds = array<i64: 1, 32>}, {pipeline_mode = #tpu.pipeline_mode<synchronous>, transform_indices = @transform_6, window_bounds = array<i64: 1, 32>}, {pipeline_mode = #tpu.pipeline_mode<synchronous>, transform_indices = @transform_7, window_bounds = array<i64: 32, 64>}, {pipeline_mode = #tpu.pipeline_mode<synchronous>, transform_indices = @transform_8, window_bounds = array<i64: 1, 64>}, {pipeline_mode = #tpu.pipeline_mode<synchronous>, transform_indices = @transform_9, window_bounds = array<i64: 64, 32>}, {pipeline_mode = #tpu.pipeline_mode<synchronous>, transform_indices = @transform_10, window_bounds = array<i64: 1, 32>}, {pipeline_mode = #tpu.pipeline_mode<synchronous>, transform_indices = @transform_11, window_bounds = array<i64: 1, 32>}, {pipeline_mode = #tpu.pipeline_mode<synchronous>, transform_indices = @transform_12, window_bounds = array<i64: 1, 32>}, {transform_indices = @transform_13, window_bounds = array<i64: 1, 8, 32>}, {transform_indices = @transform_14, window_bounds = array<i64: 1, 4, 8, 8>}]} {
    %c0 = arith.constant 0 : index
    %c0_0 = arith.constant 0 : index
    %c0_1 = arith.constant 0 : index
    %0 = vector.load %arg2[%c0, %c0_0, %c0_1] : memref<1x8x32xf32, #tpu.memory_space<vmem>>, vector<1x8x32xf32>
    %1 = vector.shape_cast %0 : vector<1x8x32xf32> to vector<8x32xf32>
    %2 = arith.truncf %1 : vector<8x32xf32> to vector<8x32xbf16>
    %c0_2 = arith.constant 0 : index
    %c0_3 = arith.constant 0 : index
    %3 = vector.load %arg5[%c0_2, %c0_3] : memref<32x32xbf16, #tpu.memory_space<vmem>>, vector<32x32xbf16>
    %cst = arith.constant dense<0.000000e+00> : vector<8x32xf32>
    %4 = tpu.matmul %2, %3, %cst {dimension_numbers = #tpu.dot_dimension_numbers<[1], [0], [0], [1], [0, 0, 1, 1], [], []>} : vector<8x32xbf16>, vector<32x32xbf16>, vector<8x32xf32> -> vector<8x32xf32>
    %c0_4 = arith.constant 0 : index
    %c0_5 = arith.constant 0 : index
    %5 = vector.load %arg6[%c0_4, %c0_5] : memref<1x32xf32, #tpu.memory_space<vmem>>, vector<1x32xf32>
    %6 = vector.broadcast %5 : vector<1x32xf32> to vector<8x32xf32>
    %7 = arith.addf %4, %6 : vector<8x32xf32>
    %8 = vector.shape_cast %7 : vector<8x32xf32> to vector<8x4x8xf32>
    %9 = arith.truncf %8 : vector<8x4x8xf32> to vector<8x4x8xbf16>
    %c0_6 = arith.constant 0 : index
    %c0_7 = arith.constant 0 : index
    %c0_8 = arith.constant 0 : index
    %c0_9 = arith.constant 0 : index
    %10 = vector.load %arg3[%c0_6, %c0_7, %c0_8, %c0_9] : memref<1x4x8x8xbf16, #tpu.memory_space<vmem>>, vector<1x4x8x8xbf16>
    %11 = vector.shape_cast %10 : vector<1x4x8x8xbf16> to vector<4x8x8xbf16>
    %c0_10 = arith.constant 0 : index
    %c0_11 = arith.constant 0 : index
    %c0_12 = arith.constant 0 : index
    %c0_13 = arith.constant 0 : index
    %12 = vector.load %arg4[%c0_10, %c0_11, %c0_12, %c0_13] : memref<1x4x8x8xbf16, #tpu.memory_space<vmem>>, vector<1x4x8x8xbf16>
    %13 = vector.shape_cast %12 : vector<1x4x8x8xbf16> to vector<4x8x8xbf16>
    "tpu.trace_start"() <{level = 10 : i32, message = "qhd,hkd->hqk"}> : () -> ()
    %cst_14 = arith.constant dense<0.000000e+00> : vector<4x8x8xf32>
    %14 = tpu.matmul %9, %11, %cst_14 {dimension_numbers = #tpu.dot_dimension_numbers<[2], [2], [0], [1], [0, 1, 0, 0, 1, 1], [1], [0]>} : vector<8x4x8xbf16>, vector<4x8x8xbf16>, vector<4x8x8xf32> -> vector<4x8x8xf32>
    "tpu.trace_stop"() : () -> ()
    %cst_15 = arith.constant dense<0xFF800000> : vector<4x8xf32>
    %15 = vector.multi_reduction <maximumf>, %14, %cst_15 [2] : vector<4x8x8xf32> to vector<4x8xf32>
    %16 = vector.shape_cast %15 : vector<4x8xf32> to vector<4x8x1xf32>
    %17 = vector.broadcast %16 : vector<4x8x1xf32> to vector<4x8x8xf32>
    %18 = arith.subf %14, %17 : vector<4x8x8xf32>
    %19 = math.exp %18 : vector<4x8x8xf32>
    %cst_16 = arith.constant dense<0.000000e+00> : vector<4x8xf32>
    %20 = vector.multi_reduction <add>, %19, %cst_16 [2] : vector<4x8x8xf32> to vector<4x8xf32>
    %21 = vector.shape_cast %20 : vector<4x8xf32> to vector<4x8x1xf32>
    %22 = vector.broadcast %21 : vector<4x8x1xf32> to vector<4x8x8xf32>
    %23 = arith.divf %19, %22 : vector<4x8x8xf32>
    %24 = arith.truncf %23 : vector<4x8x8xf32> to vector<4x8x8xbf16>
    %c0_17 = arith.constant 0 : index
    %c0_18 = arith.constant 0 : index
    %c0_19 = arith.constant 0 : index
    %c0_20 = arith.constant 0 : index
    %25 = vector.load %arg16[%c0_17, %c0_18, %c0_19, %c0_20] : memref<1x4x8x8xbf16, #tpu.memory_space<vmem>>, vector<1x4x8x8xbf16>
    %26 = vector.shape_cast %25 : vector<1x4x8x8xbf16> to vector<4x8x8xbf16>
    %27 = vector.shape_cast %24 : vector<4x8x8xbf16> to vector<1x4x8x8xbf16>
    tpu.vector_store %arg16[%c0_17, %c0_18, %c0_19, %c0_20], %27 {strides = array<i32>} : memref<1x4x8x8xbf16, #tpu.memory_space<vmem>>, vector<1x4x8x8xbf16>,
    %28 = arith.truncf %23 : vector<4x8x8xf32> to vector<4x8x8xbf16>
    "tpu.trace_start"() <{level = 10 : i32, message = "hqk,hkd->qhd"}> : () -> ()
    %cst_21 = arith.constant dense<0.000000e+00> : vector<4x8x8xf32>
    %29 = tpu.matmul %13, %28, %cst_21 {dimension_numbers = #tpu.dot_dimension_numbers<[1], [2], [2], [1], [0, 0, 0, 2, 1, 1], [0], [0]>} : vector<4x8x8xbf16>, vector<4x8x8xbf16>, vector<4x8x8xf32> -> vector<4x8x8xf32>
    %30 = tpu.transpose %29, [2, 0, 1] : vector<4x8x8xf32> -> vector<8x4x8xf32>
    "tpu.trace_stop"() : () -> ()
    %31 = vector.shape_cast %30 : vector<8x4x8xf32> to vector<8x32xf32>
    %32 = arith.addf %1, %31 : vector<8x32xf32>
    %cst_22 = arith.constant dense<0.000000e+00> : vector<8xf32>
    %33 = vector.multi_reduction <add>, %32, %cst_22 [1] : vector<8x32xf32> to vector<8xf32>
    %34 = vector.shape_cast %33 : vector<8xf32> to vector<8x1xf32>
    %cst_23 = arith.constant 3.200000e+01 : f32
    %35 = vector.broadcast %cst_23 : f32 to vector<8x1xf32>
    %36 = arith.divf %34, %35 : vector<8x1xf32>
    %37 = vector.broadcast %36 : vector<8x1xf32> to vector<8x32xf32>
    %38 = arith.subf %32, %37 : vector<8x32xf32>
    %39 = arith.mulf %38, %38 : vector<8x32xf32>
    %cst_24 = arith.constant dense<0.000000e+00> : vector<8xf32>
    %40 = vector.multi_reduction <add>, %39, %cst_24 [1] : vector<8x32xf32> to vector<8xf32>
    %41 = vector.shape_cast %40 : vector<8xf32> to vector<8x1xf32>
    %cst_25 = arith.constant 3.200000e+01 : f32
    %42 = vector.broadcast %cst_25 : f32 to vector<8x1xf32>
    %43 = arith.divf %41, %42 : vector<8x1xf32>
    %44 = vector.broadcast %36 : vector<8x1xf32> to vector<8x32xf32>
    %45 = arith.subf %32, %44 : vector<8x32xf32>
    %cst_26 = arith.constant 9.99999974E-6 : f32
    %46 = vector.broadcast %cst_26 : f32 to vector<8x1xf32>
    %47 = arith.addf %43, %46 : vector<8x1xf32>
    %48 = math.rsqrt %47 : vector<8x1xf32>
    %49 = vector.broadcast %48 : vector<8x1xf32> to vector<8x32xf32>
    %50 = arith.mulf %45, %49 : vector<8x32xf32>
    %c0_27 = arith.constant 0 : index
    %c0_28 = arith.constant 0 : index
    %51 = vector.load %arg7[%c0_27, %c0_28] : memref<1x32xf32, #tpu.memory_space<vmem>>, vector<1x32xf32>
    %52 = vector.broadcast %51 : vector<1x32xf32> to vector<8x32xf32>
    %53 = arith.mulf %50, %52 : vector<8x32xf32>
    %c0_29 = arith.constant 0 : index
    %c0_30 = arith.constant 0 : index
    %54 = vector.load %arg8[%c0_29, %c0_30] : memref<1x32xf32, #tpu.memory_space<vmem>>, vector<1x32xf32>
    %55 = vector.broadcast %54 : vector<1x32xf32> to vector<8x32xf32>
    %56 = arith.addf %53, %55 : vector<8x32xf32>
    %57 = arith.truncf %56 : vector<8x32xf32> to vector<8x32xbf16>
    %c0_31 = arith.constant 0 : index
    %c0_32 = arith.constant 0 : index
    %58 = vector.load %arg9[%c0_31, %c0_32] : memref<32x64xbf16, #tpu.memory_space<vmem>>, vector<32x64xbf16>
    %cst_33 = arith.constant dense<0.000000e+00> : vector<8x64xf32>
    %59 = tpu.matmul %57, %58, %cst_33 {dimension_numbers = #tpu.dot_dimension_numbers<[1], [0], [0], [1], [0, 0, 1, 1], [], []>} : vector<8x32xbf16>, vector<32x64xbf16>, vector<8x64xf32> -> vector<8x64xf32>
    %c0_34 = arith.constant 0 : index
    %c0_35 = arith.constant 0 : index
    %60 = vector.load %arg10[%c0_34, %c0_35] : memref<1x64xf32, #tpu.memory_space<vmem>>, vector<1x64xf32>
    %61 = vector.broadcast %60 : vector<1x64xf32> to vector<8x64xf32>
    %62 = arith.addf %59, %61 : vector<8x64xf32>
    %cst_36 = arith.constant 0.000000e+00 : f32
    %63 = vector.broadcast %cst_36 : f32 to vector<8x64xf32>
    %64 = arith.maximumf %62, %63 : vector<8x64xf32>
    %65 = arith.truncf %64 : vector<8x64xf32> to vector<8x64xbf16>
    %c0_37 = arith.constant 0 : index
    %c0_38 = arith.constant 0 : index
    %66 = vector.load %arg11[%c0_37, %c0_38] : memref<64x32xbf16, #tpu.memory_space<vmem>>, vector<64x32xbf16>
    %cst_39 = arith.constant dense<0.000000e+00> : vector<8x32xf32>
    %67 = tpu.matmul %65, %66, %cst_39 {dimension_numbers = #tpu.dot_dimension_numbers<[1], [0], [0], [1], [0, 0, 1, 1], [], []>} : vector<8x64xbf16>, vector<64x32xbf16>, vector<8x32xf32> -> vector<8x32xf32>
    %c0_40 = arith.constant 0 : index
    %c0_41 = arith.constant 0 : index
    %68 = vector.load %arg12[%c0_40, %c0_41] : memref<1x32xf32, #tpu.memory_space<vmem>>, vector<1x32xf32>
    %69 = vector.broadcast %68 : vector<1x32xf32> to vector<8x32xf32>
    %70 = arith.addf %67, %69 : vector<8x32xf32>
    %71 = arith.addf %70, %56 : vector<8x32xf32>
    %cst_42 = arith.constant dense<0.000000e+00> : vector<8xf32>
    %72 = vector.multi_reduction <add>, %71, %cst_42 [1] : vector<8x32xf32> to vector<8xf32>
    %73 = vector.shape_cast %72 : vector<8xf32> to vector<8x1xf32>
    %cst_43 = arith.constant 3.200000e+01 : f32
    %74 = vector.broadcast %cst_43 : f32 to vector<8x1xf32>
    %75 = arith.divf %73, %74 : vector<8x1xf32>
    %76 = vector.broadcast %75 : vector<8x1xf32> to vector<8x32xf32>
    %77 = arith.subf %71, %76 : vector<8x32xf32>
    %78 = arith.mulf %77, %77 : vector<8x32xf32>
    %cst_44 = arith.constant dense<0.000000e+00> : vector<8xf32>
    %79 = vector.multi_reduction <add>, %78, %cst_44 [1] : vector<8x32xf32> to vector<8xf32>
    %80 = vector.shape_cast %79 : vector<8xf32> to vector<8x1xf32>
    %cst_45 = arith.constant 3.200000e+01 : f32
    %81 = vector.broadcast %cst_45 : f32 to vector<8x1xf32>
    %82 = arith.divf %80, %81 : vector<8x1xf32>
    %83 = vector.broadcast %75 : vector<8x1xf32> to vector<8x32xf32>
    %84 = arith.subf %71, %83 : vector<8x32xf32>
    %cst_46 = arith.constant 9.99999974E-6 : f32
    %85 = vector.broadcast %cst_46 : f32 to vector<8x1xf32>
    %86 = arith.addf %82, %85 : vector<8x1xf32>
    %87 = math.rsqrt %86 : vector<8x1xf32>
    %88 = vector.broadcast %87 : vector<8x1xf32> to vector<8x32xf32>
    %89 = arith.mulf %84, %88 : vector<8x32xf32>
    %c0_47 = arith.constant 0 : index
    %c0_48 = arith.constant 0 : index
    %90 = vector.load %arg13[%c0_47, %c0_48] : memref<1x32xf32, #tpu.memory_space<vmem>>, vector<1x32xf32>
    %91 = vector.broadcast %90 : vector<1x32xf32> to vector<8x32xf32>
    %92 = arith.mulf %89, %91 : vector<8x32xf32>
    %c0_49 = arith.constant 0 : index
    %c0_50 = arith.constant 0 : index
    %93 = vector.load %arg14[%c0_49, %c0_50] : memref<1x32xf32, #tpu.memory_space<vmem>>, vector<1x32xf32>
    %94 = vector.broadcast %93 : vector<1x32xf32> to vector<8x32xf32>
    %95 = arith.addf %92, %94 : vector<8x32xf32>
    %c0_51 = arith.constant 0 : index
    %c0_52 = arith.constant 0 : index
    %c0_53 = arith.constant 0 : index
    %96 = vector.load %arg15[%c0_51, %c0_52, %c0_53] : memref<1x8x32xf32, #tpu.memory_space<vmem>>, vector<1x8x32xf32>
    %97 = vector.shape_cast %96 : vector<1x8x32xf32> to vector<8x32xf32>
    %98 = vector.shape_cast %95 : vector<8x32xf32> to vector<1x8x32xf32>
    tpu.vector_store %arg15[%c0_51, %c0_52, %c0_53], %98 {strides = array<i32>} : memref<1x8x32xf32, #tpu.memory_space<vmem>>, vector<1x8x32xf32>,
    return
  }
  func.func @transform_0(%arg0: i32, %arg1: i32) -> (i32, i32, i32) {
    %c0_i32 = arith.constant 0 : i32
    %c0_i32_0 = arith.constant 0 : i32
    return %arg0, %arg1, %c0_i32 : i32, i32, i32
  }
  func.func @transform_1(%arg0: i32, %arg1: i32) -> (i32, i32, i32, i32) {
    %c0_i32 = arith.constant 0 : i32
    %c0_i32_0 = arith.constant 0 : i32
    %c0_i32_1 = arith.constant 0 : i32
    %c0_i32_2 = arith.constant 0 : i32
    return %arg0, %c0_i32, %c0_i32_0, %c0_i32_1 : i32, i32, i32, i32
  }
  func.func @transform_2(%arg0: i32, %arg1: i32) -> (i32, i32, i32, i32) {
    %c0_i32 = arith.constant 0 : i32
    %c0_i32_0 = arith.constant 0 : i32
    %c0_i32_1 = arith.constant 0 : i32
    %c0_i32_2 = arith.constant 0 : i32
    return %arg0, %c0_i32, %c0_i32_0, %c0_i32_1 : i32, i32, i32, i32
  }
  func.func @transform_3(%arg0: i32, %arg1: i32) -> (i32, i32) {
    %c0_i32 = arith.constant 0 : i32
    %c0_i32_0 = arith.constant 0 : i32
    %c0_i32_1 = arith.constant 0 : i32
    return %c0_i32, %c0_i32_0 : i32, i32
  }
  func.func @transform_4(%arg0: i32, %arg1: i32) -> (i32, i32) {
    %c0_i32 = arith.constant 0 : i32
    %c0_i32_0 = arith.constant 0 : i32
    %c0_i32_1 = arith.constant 0 : i32
    return %c0_i32, %c0_i32_0 : i32, i32
  }
  func.func @transform_5(%arg0: i32, %arg1: i32) -> (i32, i32) {
    %c0_i32 = arith.constant 0 : i32
    %c0_i32_0 = arith.constant 0 : i32
    %c0_i32_1 = arith.constant 0 : i32
    return %c0_i32, %c0_i32_0 : i32, i32
  }
  func.func @transform_6(%arg0: i32, %arg1: i32) -> (i32, i32) {
    %c0_i32 = arith.constant 0 : i32
    %c0_i32_0 = arith.constant 0 : i32
    %c0_i32_1 = arith.constant 0 : i32
    return %c0_i32, %c0_i32_0 : i32, i32
  }
  func.func @transform_7(%arg0: i32, %arg1: i32) -> (i32, i32) {
    %c0_i32 = arith.constant 0 : i32
    %c0_i32_0 = arith.constant 0 : i32
    %c0_i32_1 = arith.constant 0 : i32
    return %c0_i32, %c0_i32_0 : i32, i32
  }
  func.func @transform_8(%arg0: i32, %arg1: i32) -> (i32, i32) {
    %c0_i32 = arith.constant 0 : i32
    %c0_i32_0 = arith.constant 0 : i32
    %c0_i32_1 = arith.constant 0 : i32
    return %c0_i32, %c0_i32_0 : i32, i32
  }
  func.func @transform_9(%arg0: i32, %arg1: i32) -> (i32, i32) {
    %c0_i32 = arith.constant 0 : i32
    %c0_i32_0 = arith.constant 0 : i32
    %c0_i32_1 = arith.constant 0 : i32
    return %c0_i32, %c0_i32_0 : i32, i32
  }
  func.func @transform_10(%arg0: i32, %arg1: i32) -> (i32, i32) {
    %c0_i32 = arith.constant 0 : i32
    %c0_i32_0 = arith.constant 0 : i32
    %c0_i32_1 = arith.constant 0 : i32
    return %c0_i32, %c0_i32_0 : i32, i32
  }
  func.func @transform_11(%arg0: i32, %arg1: i32) -> (i32, i32) {
    %c0_i32 = arith.constant 0 : i32
    %c0_i32_0 = arith.constant 0 : i32
    %c0_i32_1 = arith.constant 0 : i32
    return %c0_i32, %c0_i32_0 : i32, i32
  }
  func.func @transform_12(%arg0: i32, %arg1: i32) -> (i32, i32) {
    %c0_i32 = arith.constant 0 : i32
    %c0_i32_0 = arith.constant 0 : i32
    %c0_i32_1 = arith.constant 0 : i32
    return %c0_i32, %c0_i32_0 : i32, i32
  }
  func.func @transform_13(%arg0: i32, %arg1: i32) -> (i32, i32, i32) {
    %c0_i32 = arith.constant 0 : i32
    %c0_i32_0 = arith.constant 0 : i32
    return %arg0, %arg1, %c0_i32 : i32, i32, i32
  }
  func.func @transform_14(%arg0: i32, %arg1: i32) -> (i32, i32, i32, i32) {
    %c0_i32 = arith.constant 0 : i32
    %c0_i32_0 = arith.constant 0 : i32
    %c0_i32_1 = arith.constant 0 : i32
    return %arg0, %c0_i32, %arg1, %c0_i32_0 : i32, i32, i32, i32
  }
}

</mosaic_0001>

<llo_original>
// kernel: encoder_layer.1
$region0: #{encoder_layer.1}
  #allocation0 [shape = 'u32[]', space=smem, size = 0x4, offset = 0x4, fixed_abs, tag = 'smem constant byte address 0x4 - core index']
  #allocation1 [shape = 'u32[144,128]{1,0:T(1,128)}', space=vmem, size = 0x12000, scoped, tag = 'internal scratch']
  %s0 = inlined_call_operand.vmem [shape: f32[2,8,32], index: 0, kind: input, shape index: {}]
  %s1 = inlined_call_operand.vmem [shape: bf16[2,4,8,8], index: 1, kind: input, shape index: {}]
  %s2 = inlined_call_operand.vmem [shape: bf16[2,4,8,8], index: 2, kind: input, shape index: {}]
  %s3 = inlined_call_operand.vmem [shape: bf16[32,32], index: 3, kind: input, shape index: {}]
  %s4 = inlined_call_operand.vmem [shape: f32[1,32], index: 4, kind: input, shape index: {}]
  %s5 = inlined_call_operand.vmem [shape: f32[1,32], index: 5, kind: input, shape index: {}]
  %s6 = inlined_call_operand.vmem [shape: f32[1,32], index: 6, kind: input, shape index: {}]
  %s7 = inlined_call_operand.vmem [shape: bf16[32,64], index: 7, kind: input, shape index: {}]
  %s8 = inlined_call_operand.vmem [shape: f32[1,64], index: 8, kind: input, shape index: {}]
  %s9 = inlined_call_operand.vmem [shape: bf16[64,32], index: 9, kind: input, shape index: {}]
  %s10 = inlined_call_operand.vmem [shape: f32[1,32], index: 10, kind: input, shape index: {}]
  %s11 = inlined_call_operand.vmem [shape: f32[1,32], index: 11, kind: input, shape index: {}]
  %s12 = inlined_call_operand.vmem [shape: f32[1,32], index: 12, kind: input, shape index: {}]
  %s13 = inlined_call_operand.hbm [shape: f32[2,8,32], index: 13, kind: output, shape index: {0}]
  %s14 = inlined_call_operand.hbm [shape: bf16[2,4,8,8], index: 14, kind: output, shape index: {1}]
  %15 = xla_tuple %s13, %s14
  %s16 = sld [smem:[#allocation0]]
  $region93: #{encoder_layer.1} parent=0
    _
  %s18 = ssub.s32 1, %s16
  %s19 = scalar_select 0, %s18, %s16
  $region1: #{encoder_layer.1} parent=0
    #allocation2 [shape = 'u8[8192]{0}', space=vmem, size = 0x2000, scoped, tag = 'output window, operand 0']
    #allocation3 [shape = 's32[2]{0}', space=sflag, size = 0x8, scoped, tag = 'scoped memory for encoder_layer.1']
    #allocation4 [shape = 'u8[16384]{0}', space=vmem, size = 0x4000, scoped, tag = 'output window, operand 1']
    #allocation5 [shape = 's32[2]{0}', space=sflag, size = 0x8, scoped, tag = 'scoped memory for encoder_layer.1']
    %20 = vsyncpa [#allocation3], 0
    %s21 = scalar_lea.sflag [#allocation3], 1
    %22 = vsyncpa %s21, 0
    %23 = vsyncpa [#allocation5], 0
    %s24 = scalar_lea.sflag [#allocation5], 1
    %25 = vsyncpa %s24, 0
    loop: start=0, step=1, limit=4
    $region2: #{encoder_layer.1} parent=1 // loop_pre_header
      _
    $region3: #{encoder_layer.1} parent=1 // loop_header
      %s27 = sphi 0, %s31
      %p28 = scmp.ge.s32.totalorder %s27, 4
      %s34 = sphi 0, %s46
      %s35 = sphi 0, %s42
      %s36 = sphi 0, %s34
      %s37 = sphi 0, %s35
      %s38 = sphi 0, %s36
      %s39 = sphi 0, %s37
      %s51 = sphi 0, %s53
      %s54 = sphi 0, %s51
      %s55 = sphi 0, %s54
      %s71 = sphi 0, %s55
      %s77 = sphi 0, %s79
      %s80 = sphi 0, %s77
      %s81 = sphi 0, %s80
      %s97 = sphi 0, %s81
      %s103 = sphi 0, %s105
      %s106 = sphi 0, %s103
      %s107 = sphi 0, %s106
      %s123 = sphi 0, %s107
      %s127 = sphi 0, %s127
      %s129 = sphi 0, %s127
      %s130 = sphi 0, %s129
      %s144 = sphi 0, %s130
      %s148 = sphi 0, %s148
      %s150 = sphi 0, %s148
      %s151 = sphi 0, %s150
      %s165 = sphi 0, %s151
      %s169 = sphi 0, %s169
      %s171 = sphi 0, %s169
      %s172 = sphi 0, %s171
      %s186 = sphi 0, %s172
      %s190 = sphi 0, %s190
      %s192 = sphi 0, %s190
      %s193 = sphi 0, %s192
      %s207 = sphi 0, %s193
      %s211 = sphi 0, %s211
      %s213 = sphi 0, %s211
      %s214 = sphi 0, %s213
      %s228 = sphi 0, %s214
      %s232 = sphi 0, %s232
      %s234 = sphi 0, %s232
      %s235 = sphi 0, %s234
      %s249 = sphi 0, %s235
      %s253 = sphi 0, %s253
      %s255 = sphi 0, %s253
      %s256 = sphi 0, %s255
      %s270 = sphi 0, %s256
      %s274 = sphi 0, %s274
      %s276 = sphi 0, %s274
      %s277 = sphi 0, %s276
      %s291 = sphi 0, %s277
      %s295 = sphi 0, %s295
      %s297 = sphi 0, %s295
      %s298 = sphi 0, %s297
      %s312 = sphi 0, %s298
      %s316 = sphi 0, %s316
      %s318 = sphi 0, %s316
      %s319 = sphi 0, %s318
      %s333 = sphi 0, %s319
      %s341 = sphi 0, %s343
      %s344 = sphi 0, %s341
      %s345 = sphi 0, %s344
      %s361 = sphi 0, %s345
      %s369 = sphi 0, %s371
      %s372 = sphi 0, %s369
      %s373 = sphi 0, %s372
      %s389 = sphi 0, %s373
    $region4: #{encoder_layer.1} parent=1 // loop_header_branch
      %30 = sbr.rel (%p28) target = $region8
    $region5: #{encoder_layer.1} parent=1 // loop_body
      %s32 = ssub.s32 %s27, 1
      %s33 = ssub.s32 %s27, 2
      %s40 = sadd.s32 1, %s35
      %p41 = scmp.ge.s32.totalorder %s40, 1
      %s42 = scalar_select %p41, 0, %s40
      %s43 = sadd.s32 1, %s34
      %s44 = scalar_select %p41, %s43, %s34
      %p45 = scmp.ge.s32.totalorder %s44, 2
      %s46 = scalar_select %p45, 0, %s44
      %s47 = ssub.s32 %s34, %s46
      %s48 = ssub.s32 %s35, %s42
      %s49 = sor.u32 %s47, %s48
      %p50 = scmp.eq.s32.totalorder %s49, 0
      %s52 = sadd.s32 %s51, 1
      %s53 = scalar_select %p50, %s51, %s52
      %p56 = pneg %p50
      %p57 = scmp.eq.s32.totalorder %s27, 1
      %p58 = por %p56, %p57
      %p59 = scmp.ne.s32.totalorder %s51, %s54
      %p60 = scmp.eq.s32.totalorder %s27, 0
      %p61 = por %p59, %p60
      %p62 = scmp.ne.s32.totalorder %s51, %s54
      %p63 = scmp.eq.s32.totalorder %s32, 1
      %p64 = por %p62, %p63
      %p65 = scmp.ne.s32.totalorder %s54, %s55
      %p66 = scmp.eq.s32.totalorder %s32, 0
      %p67 = por %p65, %p66
      %p68 = scmp.ne.s32.totalorder %s54, %s55
      %p69 = scmp.eq.s32.totalorder %s33, 1
      %p70 = por %p68, %p69
      %p72 = scmp.ne.s32.totalorder %s55, %s71
      %p73 = scmp.eq.s32.totalorder %s33, 0
      %p74 = por %p72, %p73
      %s75 = ssub.s32 %s34, %s46
      %p76 = scmp.eq.s32.totalorder %s75, 0
      %s78 = sadd.s32 %s77, 1
      %s79 = scalar_select %p76, %s77, %s78
      %p82 = pneg %p76
      %p83 = scmp.eq.s32.totalorder %s27, 1
      %p84 = por %p82, %p83
      %p85 = scmp.ne.s32.totalorder %s77, %s80
      %p86 = scmp.eq.s32.totalorder %s27, 0
      %p87 = por %p85, %p86
      %p88 = scmp.ne.s32.totalorder %s77, %s80
      %p89 = scmp.eq.s32.totalorder %s32, 1
      %p90 = por %p88, %p89
      %p91 = scmp.ne.s32.totalorder %s80, %s81
      %p92 = scmp.eq.s32.totalorder %s32, 0
      %p93 = por %p91, %p92
      %p94 = scmp.ne.s32.totalorder %s80, %s81
      %p95 = scmp.eq.s32.totalorder %s33, 1
      %p96 = por %p94, %p95
      %p98 = scmp.ne.s32.totalorder %s81, %s97
      %p99 = scmp.eq.s32.totalorder %s33, 0
      %p100 = por %p98, %p99
      %s101 = ssub.s32 %s34, %s46
      %p102 = scmp.eq.s32.totalorder %s101, 0
      %s104 = sadd.s32 %s103, 1
      %s105 = scalar_select %p102, %s103, %s104
      %p108 = pneg %p102
      %p109 = scmp.eq.s32.totalorder %s27, 1
      %p110 = por %p108, %p109
      %p111 = scmp.ne.s32.totalorder %s103, %s106
      %p112 = scmp.eq.s32.totalorder %s27, 0
      %p113 = por %p111, %p112
      %p114 = scmp.ne.s32.totalorder %s103, %s106
      %p115 = scmp.eq.s32.totalorder %s32, 1
      %p116 = por %p114, %p115
      %p117 = scmp.ne.s32.totalorder %s106, %s107
      %p118 = scmp.eq.s32.totalorder %s32, 0
      %p119 = por %p117, %p118
      %p120 = scmp.ne.s32.totalorder %s106, %s107
      %p121 = scmp.eq.s32.totalorder %s33, 1
      %p122 = por %p120, %p121
      %p124 = scmp.ne.s32.totalorder %s107, %s123
      %p125 = scmp.eq.s32.totalorder %s33, 0
      %p126 = por %p124, %p125
      %s128 = sadd.s32 %s127, 1
      %p131 = scmp.eq.s32.totalorder %s27, 1
      %p132 = scmp.ne.s32.totalorder %s127, %s129
      %p133 = scmp.eq.s32.totalorder %s27, 0
      %p134 = por %p132, %p133
      %p135 = scmp.ne.s32.totalorder %s127, %s129
      %p136 = scmp.eq.s32.totalorder %s32, 1
      %p137 = por %p135, %p136
      %p138 = scmp.ne.s32.totalorder %s129, %s130
      %p139 = scmp.eq.s32.totalorder %s32, 0
      %p140 = por %p138, %p139
      %p141 = scmp.ne.s32.totalorder %s129, %s130
      %p142 = scmp.eq.s32.totalorder %s33, 1
      %p143 = por %p141, %p142
      %p145 = scmp.ne.s32.totalorder %s130, %s144
      %p146 = scmp.eq.s32.totalorder %s33, 0
      %p147 = por %p145, %p146
      %s149 = sadd.s32 %s148, 1
      %p152 = scmp.eq.s32.totalorder %s27, 1
      %p153 = scmp.ne.s32.totalorder %s148, %s150
      %p154 = scmp.eq.s32.totalorder %s27, 0
      %p155 = por %p153, %p154
      %p156 = scmp.ne.s32.totalorder %s148, %s150
      %p157 = scmp.eq.s32.totalorder %s32, 1
      %p158 = por %p156, %p157
      %p159 = scmp.ne.s32.totalorder %s150, %s151
      %p160 = scmp.eq.s32.totalorder %s32, 0
      %p161 = por %p159, %p160
      %p162 = scmp.ne.s32.totalorder %s150, %s151
      %p163 = scmp.eq.s32.totalorder %s33, 1
      %p164 = por %p162, %p163
      %p166 = scmp.ne.s32.totalorder %s151, %s165
      %p167 = scmp.eq.s32.totalorder %s33, 0
      %p168 = por %p166, %p167
      %s170 = sadd.s32 %s169, 1
      %p173 = scmp.eq.s32.totalorder %s27, 1
      %p174 = scmp.ne.s32.totalorder %s169, %s171
      %p175 = scmp.eq.s32.totalorder %s27, 0
      %p176 = por %p174, %p175
      %p177 = scmp.ne.s32.totalorder %s169, %s171
      %p178 = scmp.eq.s32.totalorder %s32, 1
      %p179 = por %p177, %p178
      %p180 = scmp.ne.s32.totalorder %s171, %s172
      %p181 = scmp.eq.s32.totalorder %s32, 0
      %p182 = por %p180, %p181
      %p183 = scmp.ne.s32.totalorder %s171, %s172
      %p184 = scmp.eq.s32.totalorder %s33, 1
      %p185 = por %p183, %p184
      %p187 = scmp.ne.s32.totalorder %s172, %s186
      %p188 = scmp.eq.s32.totalorder %s33, 0
      %p189 = por %p187, %p188
      %s191 = sadd.s32 %s190, 1
      %p194 = scmp.eq.s32.totalorder %s27, 1
      %p195 = scmp.ne.s32.totalorder %s190, %s192
      %p196 = scmp.eq.s32.totalorder %s27, 0
      %p197 = por %p195, %p196
      %p198 = scmp.ne.s32.totalorder %s190, %s192
      %p199 = scmp.eq.s32.totalorder %s32, 1
      %p200 = por %p198, %p199
      %p201 = scmp.ne.s32.totalorder %s192, %s193
      %p202 = scmp.eq.s32.totalorder %s32, 0
      %p203 = por %p201, %p202
      %p204 = scmp.ne.s32.totalorder %s192, %s193
      %p205 = scmp.eq.s32.totalorder %s33, 1
      %p206 = por %p204, %p205
      %p208 = scmp.ne.s32.totalorder %s193, %s207
      %p209 = scmp.eq.s32.totalorder %s33, 0
      %p210 = por %p208, %p209
      %s212 = sadd.s32 %s211, 1
      %p215 = scmp.eq.s32.totalorder %s27, 1
      %p216 = scmp.ne.s32.totalorder %s211, %s213
      %p217 = scmp.eq.s32.totalorder %s27, 0
      %p218 = por %p216, %p217
      %p219 = scmp.ne.s32.totalorder %s211, %s213
      %p220 = scmp.eq.s32.totalorder %s32, 1
      %p221 = por %p219, %p220
      %p222 = scmp.ne.s32.totalorder %s213, %s214
      %p223 = scmp.eq.s32.totalorder %s32, 0
      %p224 = por %p222, %p223
      %p225 = scmp.ne.s32.totalorder %s213, %s214
      %p226 = scmp.eq.s32.totalorder %s33, 1
      %p227 = por %p225, %p226
      %p229 = scmp.ne.s32.totalorder %s214, %s228
      %p230 = scmp.eq.s32.totalorder %s33, 0
      %p231 = por %p229, %p230
      %s233 = sadd.s32 %s232, 1
      %p236 = scmp.eq.s32.totalorder %s27, 1
      %p237 = scmp.ne.s32.totalorder %s232, %s234
      %p238 = scmp.eq.s32.totalorder %s27, 0
      %p239 = por %p237, %p238
      %p240 = scmp.ne.s32.totalorder %s232, %s234
      %p241 = scmp.eq.s32.totalorder %s32, 1
      %p242 = por %p240, %p241
      %p243 = scmp.ne.s32.totalorder %s234, %s235
      %p244 = scmp.eq.s32.totalorder %s32, 0
      %p245 = por %p243, %p244
      %p246 = scmp.ne.s32.totalorder %s234, %s235
      %p247 = scmp.eq.s32.totalorder %s33, 1
      %p248 = por %p246, %p247
      %p250 = scmp.ne.s32.totalorder %s235, %s249
      %p251 = scmp.eq.s32.totalorder %s33, 0
      %p252 = por %p250, %p251
      %s254 = sadd.s32 %s253, 1
      %p257 = scmp.eq.s32.totalorder %s27, 1
      %p258 = scmp.ne.s32.totalorder %s253, %s255
      %p259 = scmp.eq.s32.totalorder %s27, 0
      %p260 = por %p258, %p259
      %p261 = scmp.ne.s32.totalorder %s253, %s255
      %p262 = scmp.eq.s32.totalorder %s32, 1
      %p263 = por %p261, %p262
      %p264 = scmp.ne.s32.totalorder %s255, %s256
      %p265 = scmp.eq.s32.totalorder %s32, 0
      %p266 = por %p264, %p265
      %p267 = scmp.ne.s32.totalorder %s255, %s256
      %p268 = scmp.eq.s32.totalorder %s33, 1
      %p269 = por %p267, %p268
      %p271 = scmp.ne.s32.totalorder %s256, %s270
      %p272 = scmp.eq.s32.totalorder %s33, 0
      %p273 = por %p271, %p272
      %s275 = sadd.s32 %s274, 1
      %p278 = scmp.eq.s32.totalorder %s27, 1
      %p279 = scmp.ne.s32.totalorder %s274, %s276
      %p280 = scmp.eq.s32.totalorder %s27, 0
      %p281 = por %p279, %p280
      %p282 = scmp.ne.s32.totalorder %s274, %s276
      %p283 = scmp.eq.s32.totalorder %s32, 1
      %p284 = por %p282, %p283
      %p285 = scmp.ne.s32.totalorder %s276, %s277
      %p286 = scmp.eq.s32.totalorder %s32, 0
      %p287 = por %p285, %p286
      %p288 = scmp.ne.s32.totalorder %s276, %s277
      %p289 = scmp.eq.s32.totalorder %s33, 1
      %p290 = por %p288, %p289
      %p292 = scmp.ne.s32.totalorder %s277, %s291
      %p293 = scmp.eq.s32.totalorder %s33, 0
      %p294 = por %p292, %p293
      %s296 = sadd.s32 %s295, 1
      %p299 = scmp.eq.s32.totalorder %s27, 1
      %p300 = scmp.ne.s32.totalorder %s295, %s297
      %p301 = scmp.eq.s32.totalorder %s27, 0
      %p302 = por %p300, %p301
      %p303 = scmp.ne.s32.totalorder %s295, %s297
      %p304 = scmp.eq.s32.totalorder %s32, 1
      %p305 = por %p303, %p304
      %p306 = scmp.ne.s32.totalorder %s297, %s298
      %p307 = scmp.eq.s32.totalorder %s32, 0
      %p308 = por %p306, %p307
      %p309 = scmp.ne.s32.totalorder %s297, %s298
      %p310 = scmp.eq.s32.totalorder %s33, 1
      %p311 = por %p309, %p310
      %p313 = scmp.ne.s32.totalorder %s298, %s312
      %p314 = scmp.eq.s32.totalorder %s33, 0
      %p315 = por %p313, %p314
      %s317 = sadd.s32 %s316, 1
      %p320 = scmp.eq.s32.totalorder %s27, 1
      %p321 = scmp.ne.s32.totalorder %s316, %s318
      %p322 = scmp.eq.s32.totalorder %s27, 0
      %p323 = por %p321, %p322
      %p324 = scmp.ne.s32.totalorder %s316, %s318
      %p325 = scmp.eq.s32.totalorder %s32, 1
      %p326 = por %p324, %p325
      %p327 = scmp.ne.s32.totalorder %s318, %s319
      %p328 = scmp.eq.s32.totalorder %s32, 0
      %p329 = por %p327, %p328
      %p330 = scmp.ne.s32.totalorder %s318, %s319
      %p331 = scmp.eq.s32.totalorder %s33, 1
      %p332 = por %p330, %p331
      %p334 = scmp.ne.s32.totalorder %s319, %s333
      %p335 = scmp.eq.s32.totalorder %s33, 0
      %p336 = por %p334, %p335
      %s337 = ssub.s32 %s34, %s46
      %s338 = ssub.s32 %s35, %s42
      %s339 = sor.u32 %s337, %s338
      %p340 = scmp.eq.s32.totalorder %s339, 0
      %s342 = sadd.s32 %s341, 1
      %s343 = scalar_select %p340, %s341, %s342
      %p346 = pneg %p340
      %p347 = scmp.eq.s32.totalorder %s27, 1
      %p348 = por %p346, %p347
      %p349 = scmp.ne.s32.totalorder %s341, %s344
      %p350 = scmp.eq.s32.totalorder %s27, 0
      %p351 = por %p349, %p350
      %p352 = scmp.ne.s32.totalorder %s341, %s344
      %p353 = scmp.eq.s32.totalorder %s32, 1
      %p354 = por %p352, %p353
      %p355 = scmp.ne.s32.totalorder %s344, %s345
      %p356 = scmp.eq.s32.totalorder %s32, 0
      %p357 = por %p355, %p356
      %p358 = scmp.ne.s32.totalorder %s344, %s345
      %p359 = scmp.eq.s32.totalorder %s33, 1
      %p360 = por %p358, %p359
      %p362 = scmp.ne.s32.totalorder %s345, %s361
      %p363 = scmp.eq.s32.totalorder %s33, 0
      %p364 = por %p362, %p363
      %s365 = ssub.s32 %s34, %s46
      %s366 = ssub.s32 %s35, %s42
      %s367 = sor.u32 %s365, %s366
      %p368 = scmp.eq.s32.totalorder %s367, 0
      %s370 = sadd.s32 %s369, 1
      %s371 = scalar_select %p368, %s369, %s370
      %p374 = pneg %p368
      %p375 = scmp.eq.s32.totalorder %s27, 1
      %p376 = por %p374, %p375
      %p377 = scmp.ne.s32.totalorder %s369, %s372
      %p378 = scmp.eq.s32.totalorder %s27, 0
      %p379 = por %p377, %p378
      %p380 = scmp.ne.s32.totalorder %s369, %s372
      %p381 = scmp.eq.s32.totalorder %s32, 1
      %p382 = por %p380, %p381
      %p383 = scmp.ne.s32.totalorder %s372, %s373
      %p384 = scmp.eq.s32.totalorder %s32, 0
      %p385 = por %p383, %p384
      %p386 = scmp.ne.s32.totalorder %s372, %s373
      %p387 = scmp.eq.s32.totalorder %s33, 1
      %p388 = por %p386, %p387
      %p390 = scmp.ne.s32.totalorder %s373, %s389
      %p391 = scmp.eq.s32.totalorder %s33, 0
      %p392 = por %p390, %p391
      %p393 = scmp.le.s32.totalorder 1, %s27
      %p394 = scmp.lt.s32.totalorder %s27, 3
      %p395 = pnand %p393, %p394
      %p396 = pneg %p395
      // Predicated region
      $region9: #{encoder_layer.1} parent=5 // pred_check
        _
      $region10: #{encoder_layer.1} parent=5 // pred_check_branch
        %398 = sbr.rel (%p395) target = $region12
      $region11: #{encoder_layer.1} parent=5 // pred_region
        %s399 = ssub.s32 %s27, 1
        // Predicated region
        $region13: #{encoder_layer.1} parent=11 // pred_check
          %p400 = pneg %p140
        $region14: #{encoder_layer.1} parent=11 // pred_check_branch
          %402 = sbr.rel (%p400) target = $region16
        $region15: #{encoder_layer.1} parent=11 // pred_region
          _
        $region16: #{encoder_layer.1} parent=11 // pred_fallthru
          _
        // Predicated region
        $region17: #{encoder_layer.1} parent=11 // pred_check
          %p403 = pneg %p161
        $region18: #{encoder_layer.1} parent=11 // pred_check_branch
          %405 = sbr.rel (%p403) target = $region20
        $region19: #{encoder_layer.1} parent=11 // pred_region
          _
        $region20: #{encoder_layer.1} parent=11 // pred_fallthru
          _
        // Predicated region
        $region21: #{encoder_layer.1} parent=11 // pred_check
          %p406 = pneg %p182
        $region22: #{encoder_layer.1} parent=11 // pred_check_branch
          %408 = sbr.rel (%p406) target = $region24
        $region23: #{encoder_layer.1} parent=11 // pred_region
          _
        $region24: #{encoder_layer.1} parent=11 // pred_fallthru
          _
        // Predicated region
        $region25: #{encoder_layer.1} parent=11 // pred_check
          %p409 = pneg %p203
        $region26: #{encoder_layer.1} parent=11 // pred_check_branch
          %411 = sbr.rel (%p409) target = $region28
        $region27: #{encoder_layer.1} parent=11 // pred_region
          _
        $region28: #{encoder_layer.1} parent=11 // pred_fallthru
          _
        // Predicated region
        $region29: #{encoder_layer.1} parent=11 // pred_check
          %p412 = pneg %p224
        $region30: #{encoder_layer.1} parent=11 // pred_check_branch
          %414 = sbr.rel (%p412) target = $region32
        $region31: #{encoder_layer.1} parent=11 // pred_region
          _
        $region32: #{encoder_layer.1} parent=11 // pred_fallthru
          _
        // Predicated region
        $region33: #{encoder_layer.1} parent=11 // pred_check
          %p415 = pneg %p245
        $region34: #{encoder_layer.1} parent=11 // pred_check_branch
          %417 = sbr.rel (%p415) target = $region36
        $region35: #{encoder_layer.1} parent=11 // pred_region
          _
        $region36: #{encoder_layer.1} parent=11 // pred_fallthru
          _
        // Predicated region
        $region37: #{encoder_layer.1} parent=11 // pred_check
          %p418 = pneg %p266
        $region38: #{encoder_layer.1} parent=11 // pred_check_branch
          %420 = sbr.rel (%p418) target = $region40
        $region39: #{encoder_layer.1} parent=11 // pred_region
          _
        $region40: #{encoder_layer.1} parent=11 // pred_fallthru
          _
        // Predicated region
        $region41: #{encoder_layer.1} parent=11 // pred_check
          %p421 = pneg %p287
        $region42: #{encoder_layer.1} parent=11 // pred_check_branch
          %423 = sbr.rel (%p421) target = $region44
        $region43: #{encoder_layer.1} parent=11 // pred_region
          _
        $region44: #{encoder_layer.1} parent=11 // pred_fallthru
          _
        // Predicated region
        $region45: #{encoder_layer.1} parent=11 // pred_check
          %p424 = pneg %p308
        $region46: #{encoder_layer.1} parent=11 // pred_check_branch
          %426 = sbr.rel (%p424) target = $region48
        $region47: #{encoder_layer.1} parent=11 // pred_region
          _
        $region48: #{encoder_layer.1} parent=11 // pred_fallthru
          _
        // Predicated region
        $region49: #{encoder_layer.1} parent=11 // pred_check
          %p427 = pneg %p329
        $region50: #{encoder_layer.1} parent=11 // pred_check_branch
          %429 = sbr.rel (%p427) target = $region52
        $region51: #{encoder_layer.1} parent=11 // pred_region
          _
        $region52: #{encoder_layer.1} parent=11 // pred_fallthru
          _
      $region12: #{encoder_layer.1} parent=5 // pred_fallthru
        _
      %p430 = scmp.lt.s32.totalorder %s27, 2
      // Predicated region
      $region53: #{encoder_layer.1} parent=5 // pred_check
        %p431 = pneg %p430
      $region54: #{encoder_layer.1} parent=5 // pred_check_branch
        %433 = sbr.rel (%p431) target = $region56
      $region55: #{encoder_layer.1} parent=5 // pred_region
        // Predicated region
        $region57: #{encoder_layer.1} parent=55 // pred_check
          %p434 = pneg %p61
        $region58: #{encoder_layer.1} parent=55 // pred_check_branch
          %436 = sbr.rel (%p434) target = $region60
        $region59: #{encoder_layer.1} parent=55 // pred_region
          %p437 = scmp.lt.s32.totalorder %s34, 1
          %s438 = scalar_select %p437, %s34, 1
          %p439 = scmp.lt.s32.totalorder %s35, 0
          %s440 = scalar_select %p439, %s35, 0
          %s441 = sadd.s32 %s440, %s438
          %s442 = smul.addr %s441, 8
          %s443 = scalar_lea.vmem %s0, %s442
        $region60: #{encoder_layer.1} parent=55 // pred_fallthru
          _
        // Predicated region
        $region61: #{encoder_layer.1} parent=55 // pred_check
          %p444 = pneg %p87
        $region62: #{encoder_layer.1} parent=55 // pred_check_branch
          %446 = sbr.rel (%p444) target = $region64
        $region63: #{encoder_layer.1} parent=55 // pred_region
          %p447 = scmp.lt.s32.totalorder %s34, 1
          %s448 = scalar_select %p447, %s34, 1
          %s449 = smul.addr %s448, 4
          %s450 = smul.addr %s449, 4
          %s451 = scalar_lea.vmem %s1, %s450
        $region64: #{encoder_layer.1} parent=55 // pred_fallthru
          _
        // Predicated region
        $region65: #{encoder_layer.1} parent=55 // pred_check
          %p452 = pneg %p113
        $region66: #{encoder_layer.1} parent=55 // pred_check_branch
          %454 = sbr.rel (%p452) target = $region68
        $region67: #{encoder_layer.1} parent=55 // pred_region
          %p455 = scmp.lt.s32.totalorder %s34, 1
          %s456 = scalar_select %p455, %s34, 1
          %s457 = smul.addr %s456, 4
          %s458 = smul.addr %s457, 4
          %s459 = scalar_lea.vmem %s2, %s458
        $region68: #{encoder_layer.1} parent=55 // pred_fallthru
          _
      $region56: #{encoder_layer.1} parent=5 // pred_fallthru
        _
      %p460 = scmp.le.s32.totalorder 1, %s27
      %p461 = scmp.lt.s32.totalorder %s27, 3
      %p462 = pnand %p460, %p461
      %p463 = pneg %p462
      // Predicated region
      $region69: #{encoder_layer.1} parent=5 // pred_check
        _
      $region70: #{encoder_layer.1} parent=5 // pred_check_branch
        %465 = sbr.rel (%p462) target = $region72
      $region71: #{encoder_layer.1} parent=5 // pred_region
        %s466 = ssub.s32 %s27, 1
        %p467 = scmp.lt.s32.totalorder %s36, 1
        %s468 = scalar_select %p467, %s36, 1
        %p469 = scmp.lt.s32.totalorder %s37, 0
        %s470 = scalar_select %p469, %s37, 0
        %s471 = sadd.s32 %s470, %s468
        %s472 = smul.addr %s471, 8
        %s473 = scalar_lea.vmem %s0, %s472
        %p474 = pneg %p67
        %p475 = pneg %p64
        %p476 = scmp.lt.s32.totalorder %s36, 1
        %s477 = scalar_select %p476, %s36, 1
        %s478 = smul.addr %s477, 4
        %s479 = smul.addr %s478, 4
        %s480 = scalar_lea.vmem %s1, %s479
        %p481 = pneg %p93
        %p482 = pneg %p90
        %p483 = scmp.lt.s32.totalorder %s36, 1
        %s484 = scalar_select %p483, %s36, 1
        %s485 = smul.addr %s484, 4
        %s486 = smul.addr %s485, 4
        %s487 = scalar_lea.vmem %s2, %s486
        %p488 = pneg %p119
        %p489 = pneg %p116
        %p490 = pneg %p140
        %p491 = pneg %p137
        %p492 = pneg %p161
        %p493 = pneg %p158
        %p494 = pneg %p182
        %p495 = pneg %p179
        %p496 = pneg %p203
        %p497 = pneg %p200
        %p498 = pneg %p224
        %p499 = pneg %p221
        %p500 = pneg %p245
        %p501 = pneg %p242
        %p502 = pneg %p266
        %p503 = pneg %p263
        %p504 = pneg %p287
        %p505 = pneg %p284
        %p506 = pneg %p308
        %p507 = pneg %p305
        %p508 = pneg %p329
        %p509 = pneg %p326
        %p510 = pneg %p357
        %p511 = pneg %p354
        %s512 = sand.u32 %s344, 1
        %s513 = scalar_lea.sflag [#allocation3], %s512
        %s514 = sand.u32 %s344, 1
        %s515 = smul.addr %s514, 8
        %s516 = scalar_lea.vmem [#allocation2], %s515
        %p517 = pneg %p385
        %p518 = pneg %p382
        %s519 = sand.u32 %s372, 1
        %s520 = scalar_lea.sflag [#allocation5], %s519
        %s521 = sand.u32 %s372, 1
        %s522 = smul.addr %s521, 16
        %s523 = scalar_lea.vmem [#allocation4], %s522
        %p524 = scmp.lt.s32.totalorder %s36, 1
        %s525 = scalar_select %p524, %s36, 1
        %p526 = scmp.lt.s32.totalorder %s37, 0
        %s527 = scalar_select %p526, %s37, 0
        %s528 = sadd.s32 %s527, %s525
        %s529 = smul.addr %s528, 8
        %s530 = scalar_lea.vmem %s0, %s529
        %p531 = scmp.lt.s32.totalorder %s36, 1
        %s532 = scalar_select %p531, %s36, 1
        %s533 = smul.addr %s532, 4
        %s534 = smul.addr %s533, 4
        %s535 = scalar_lea.vmem %s1, %s534
        %p536 = scmp.lt.s32.totalorder %s36, 1
        %s537 = scalar_select %p536, %s36, 1
        %s538 = smul.addr %s537, 4
        %s539 = smul.addr %s538, 4
        %s540 = scalar_lea.vmem %s2, %s539
        %v542 = vld [vmem:[%s530] sm:$0xff]
        %v543 = vpack.c.bf16 %v542, %v542
        %v544 = vld [vmem:[%s3] sm:$0xf]
        %v545 = vld [vmem:[%s3 + $0x4] sm:$0xf]
        %v546 = vld [vmem:[%s3 + $0x8] sm:$0xf]
        %v547 = vld [vmem:[%s3 + $0xc] sm:$0xf]
        %v548 = vld [vmem:[%s4] sm:$0x1]
        %v550 = vlaneseq
        %v551 = vshrl.u32 %v550, 7
        %v552 = vsub.s32 0, %v551
        %v553 = vrot.slane %v548, %v552
        %v559 = vunpack.c.l.b16 %v544
        %v560 = vunpack.c.l.b16 %v545
        %v561 = vunpack.c.l.b16 %v546
        %v562 = vunpack.c.l.b16 %v547
        %v563 = vpack.c.b16 %v560, %v559
        %v564 = vpack.c.b16 %v562, %v561
        %vm567 = vcmask 261120
        %v569 = vsel %vm567, %v543, 0
        %571 = vmatprep.subr.bf16.mxu0 0
        %572 = vmatpush1.bf16.msra.mxu0 %v563
        %573 = vmatprep.subr.bf16.mxu0 0
        %574 = vmatpush1.bf16.msra.mxu0 %v564
        %575 = vmatprep.subr.bf16.mxu0 0
        %576 = vmatpush1.bf16.msra.mxu0 0
        %577 = vmatprep.subr.bf16.mxu0 0
        %578 = vmatpush1.bf16.msra.mxu0 0
        %579 = vmatprep.subr.bf16.mxu0 0
        %580 = vmatpush1.bf16.msra.mxu0 0
        %581 = vmatprep.subr.bf16.mxu0 0
        %582 = vmatpush1.bf16.msra.mxu0 0
        %583 = vmatprep.subr.bf16.mxu0 0
        %584 = vmatpush1.bf16.msra.mxu0 0
        %585 = vmatprep.subr.bf16.mxu0 0
        %586 = vmatpush1.bf16.msra.mxu0 0
        %587 = vmatprep.subr.bf16.mxu0 0
        %588 = vmatpush1.bf16.msra.mxu0 0
        %589 = vmatprep.subr.bf16.mxu0 0
        %590 = vmatpush1.bf16.msra.mxu0 0
        %591 = vmatprep.subr.bf16.mxu0 0
        %592 = vmatpush1.bf16.msra.mxu0 0
        %593 = vmatprep.subr.bf16.mxu0 0
        %594 = vmatpush1.bf16.msra.mxu0 0
        %595 = vmatprep.subr.bf16.mxu0 0
        %596 = vmatpush1.bf16.msra.mxu0 0
        %597 = vmatprep.subr.bf16.mxu0 0
        %598 = vmatpush1.bf16.msra.mxu0 0
        %599 = vmatprep.subr.bf16.mxu0 0
        %600 = vmatpush1.bf16.msra.mxu0 0
        %601 = vmatprep.subr.bf16.mxu0 0
        %602 = vmatpush1.bf16.msra.mxu0 0
        %603 = vmatprep.mubr.bf16.mxu0 0
        %604 = vmatmul.mubr.bf16.gmra.mrb[0].mxu0 %v569
        %v605 = vpop.f32.mrb[0].mxu0
        %v606 = vadd.f32 %v553, %v605
        %v607 = vpop.f32.mrb[0].mxu0
        %v608 = vpop.f32.mrb[0].mxu0
        %v609 = vpop.f32.mrb[0].mxu0
        %610 = vdwg.mxu0
        %612 = vrot.lane.b32.xlu0 %v606, 120
        %v613 = vpop.permute.xlu0 %612
        %615 = vrot.lane.b32.xlu0 %v606, 112
        %v616 = vpop.permute.xlu0 %615
        %618 = vrot.lane.b32.xlu0 %v606, 104
        %v619 = vpop.permute.xlu0 %618
        %v621 = vcombine.low %v606, %v616
        %v622 = vcombine.high %v606, %v616
        %v624 = vunpack.c.l.s4 1983009808
        %v625 = vunpack.c.0.s8 %v624
        %v626 = vlaneseq
        %v627 = vshrl.u32 %v626, 7
        %v628 = vsub.s32 %v625, %v627
        %v629 = vrot.slane %v621, %v628
        %v631 = vunpack.c.l.s4 1983009808
        %v632 = vunpack.c.0.s8 %v631
        %v633 = vlaneseq
        %v634 = vshrl.u32 %v633, 7
        %v635 = vsub.s32 %v632, %v634
        %v636 = vrot.slane %v622, %v635
        %v637 = vcombine.low %v613, %v619
        %v638 = vcombine.high %v613, %v619
        %v640 = vunpack.c.l.s4 1983009808
        %v641 = vunpack.c.0.s8 %v640
        %v642 = vlaneseq
        %v643 = vshrl.u32 %v642, 7
        %v644 = vsub.s32 %v641, %v643
        %v645 = vrot.slane %v637, %v644
        %v647 = vunpack.c.l.s4 1983009808
        %v648 = vunpack.c.0.s8 %v647
        %v649 = vlaneseq
        %v650 = vshrl.u32 %v649, 7
        %v651 = vsub.s32 %v648, %v650
        %v652 = vrot.slane %v638, %v651
        %v653 = vcombine.low %v629, %v645
        %v654 = vcombine.high %v629, %v645
        %v656 = vunpack.c.l.s4 1934713408
        %v657 = vunpack.c.0.s8 %v656
        %v658 = vlaneseq
        %v659 = vshrl.u32 %v658, 7
        %v660 = vsub.s32 %v657, %v659
        %v661 = vrot.slane %v653, %v660
        %v663 = vunpack.c.l.s4 1934713408
        %v664 = vunpack.c.0.s8 %v663
        %v665 = vlaneseq
        %v666 = vshrl.u32 %v665, 7
        %v667 = vsub.s32 %v664, %v666
        %v668 = vrot.slane %v654, %v667
        %v669 = vcombine.low %v636, %v652
        %v670 = vcombine.high %v636, %v652
        %v672 = vunpack.c.l.s4 1934713408
        %v673 = vunpack.c.0.s8 %v672
        %v674 = vlaneseq
        %v675 = vshrl.u32 %v674, 7
        %v676 = vsub.s32 %v673, %v675
        %v677 = vrot.slane %v669, %v676
        %v679 = vunpack.c.l.s4 1934713408
        %v680 = vunpack.c.0.s8 %v679
        %v681 = vlaneseq
        %v682 = vshrl.u32 %v681, 7
        %v683 = vsub.s32 %v680, %v682
        %v684 = vrot.slane %v670, %v683
        %v685 = vcombine.high %v661, 0.0
        %v686 = vcombine.high %v668, 0.0
        %v687 = vcombine.high %v677, 0.0
        %v688 = vcombine.high %v684, 0.0
        %v689 = vpack.c.bf16 %v661, %v661
        %v690 = vpack.c.bf16 %v685, %v685
        %v691 = vpack.c.bf16 %v668, %v668
        %v692 = vpack.c.bf16 %v686, %v686
        %v693 = vpack.c.bf16 %v677, %v677
        %v694 = vpack.c.bf16 %v687, %v687
        %v695 = vpack.c.bf16 %v684, %v684
        %v696 = vpack.c.bf16 %v688, %v688
        %v697 = vld [vmem:[%s535] sm:$0xf]
        %v698 = vld [vmem:[%s535 + $0x4] sm:$0xf]
        %v699 = vld [vmem:[%s535 + $0x8] sm:$0xf]
        %v700 = vld [vmem:[%s535 + $0xc] sm:$0xf]
        %v701 = vld [vmem:[%s540] sm:$0xf]
        %v702 = vld [vmem:[%s540 + $0x4] sm:$0xf]
        %v703 = vld [vmem:[%s540 + $0x8] sm:$0xf]
        %v704 = vld [vmem:[%s540 + $0xc] sm:$0xf]
        %v705 = vcombine.low %v689, %v693
        %v707 = vunpack.c.l.s4 1983009808
        %v708 = vunpack.c.0.s8 %v707
        %v709 = vlaneseq
        %v710 = vshrl.u32 %v709, 7
        %v711 = vsub.s32 %v708, %v710
        %v712 = vrot.slane %v705, %v711
        %v713 = vcombine.low %v691, %v695
        %v715 = vunpack.c.l.s4 1983009808
        %v716 = vunpack.c.0.s8 %v715
        %v717 = vlaneseq
        %v718 = vshrl.u32 %v717, 7
        %v719 = vsub.s32 %v716, %v718
        %v720 = vrot.slane %v713, %v719
        %v721 = vcombine.low %v712, %v720
        %v723 = vunpack.c.l.s4 1934713408
        %v724 = vunpack.c.0.s8 %v723
        %v725 = vlaneseq
        %v726 = vshrl.u32 %v725, 7
        %v727 = vsub.s32 %v724, %v726
        %v728 = vrot.slane %v721, %v727
        %v729 = vcombine.high %v728, 0
        %v730 = vcombine.low %v690, %v694
        %v732 = vunpack.c.l.s4 1983009808
        %v733 = vunpack.c.0.s8 %v732
        %v734 = vlaneseq
        %v735 = vshrl.u32 %v734, 7
        %v736 = vsub.s32 %v733, %v735
        %v737 = vrot.slane %v730, %v736
        %v738 = vcombine.low %v692, %v696
        %v740 = vunpack.c.l.s4 1983009808
        %v741 = vunpack.c.0.s8 %v740
        %v742 = vlaneseq
        %v743 = vshrl.u32 %v742, 7
        %v744 = vsub.s32 %v741, %v743
        %v745 = vrot.slane %v738, %v744
        %v746 = vcombine.low %v737, %v745
        %v748 = vunpack.c.l.s4 1934713408
        %v749 = vunpack.c.0.s8 %v748
        %v750 = vlaneseq
        %v751 = vshrl.u32 %v750, 7
        %v752 = vsub.s32 %v749, %v751
        %v753 = vrot.slane %v746, %v752
        %v754 = vcombine.high %v753, 0
        %v757 = vpack.i.b16 %v753, %v728
        %v758 = vshrl.u32 %v728, 16
        %v759 = vshrl.u32 %v753, 16
        %v760 = vpack.i.b16 %v759, %v758
        %v763 = vpack.i.b16 %v754, %v729
        %v764 = vshrl.u32 %v729, 16
        %v765 = vshrl.u32 %v754, 16
        %v766 = vpack.i.b16 %v765, %v764
        %vm767 = vcmask 64512
        %v769 = vsel %vm767, %v757, 0
        %v772 = vsel %vm767, %v697, 0
        %774 = vmatprep.subr.bf16.mxu0 0
        %775 = vmatpush1.bf16.xpose.msra.mxu0 %v772
        %776 = vmatprep.subr.bf16.mxu0 0
        %777 = vmatpush1.bf16.xpose.msra.mxu0 0
        %778 = vmatprep.subr.bf16.mxu0 0
        %779 = vmatpush1.bf16.xpose.msra.mxu0 0
        %780 = vmatprep.subr.bf16.mxu0 0
        %781 = vmatpush1.bf16.xpose.msra.mxu0 0
        %782 = vmatprep.subr.bf16.mxu0 0
        %783 = vmatpush1.bf16.xpose.msra.mxu0 0
        %784 = vmatprep.subr.bf16.mxu0 0
        %785 = vmatpush1.bf16.xpose.msra.mxu0 0
        %786 = vmatprep.subr.bf16.mxu0 0
        %787 = vmatpush1.bf16.xpose.msra.mxu0 0
        %788 = vmatprep.subr.bf16.mxu0 0
        %789 = vmatpush1.bf16.xpose.msra.mxu0 0
        %790 = vmatprep.subr.bf16.mxu0 0
        %791 = vmatpush1.bf16.xpose.msra.mxu0 0
        %792 = vmatprep.subr.bf16.mxu0 0
        %793 = vmatpush1.bf16.xpose.msra.mxu0 0
        %794 = vmatprep.subr.bf16.mxu0 0
        %795 = vmatpush1.bf16.xpose.msra.mxu0 0
        %796 = vmatprep.subr.bf16.mxu0 0
        %797 = vmatpush1.bf16.xpose.msra.mxu0 0
        %798 = vmatprep.subr.bf16.mxu0 0
        %799 = vmatpush1.bf16.xpose.msra.mxu0 0
        %800 = vmatprep.subr.bf16.mxu0 0
        %801 = vmatpush1.bf16.xpose.msra.mxu0 0
        %802 = vmatprep.subr.bf16.mxu0 0
        %803 = vmatpush1.bf16.xpose.msra.mxu0 0
        %804 = vmatprep.subr.bf16.mxu0 0
        %805 = vmatpush1.bf16.xpose.msra.mxu0 0
        %806 = vmatprep.mubr.bf16.mxu0 0
        %807 = vmatmul.mubr.bf16.gmra.mrb[0].mxu0 %v769
        %v808 = vpop.f32.mrb[0].mxu0
        %v809 = vadd.f32 0.0, %v808
        %v810 = vpop.f32.mrb[0].mxu0
        %v811 = vpop.f32.mrb[0].mxu0
        %v812 = vpop.f32.mrb[0].mxu0
        %813 = vdwg.mxu0
        %v815 = vsel %vm767, %v760, 0
        %v818 = vsel %vm767, %v698, 0
        %820 = vmatprep.subr.bf16.mxu0 0
        %821 = vmatpush1.bf16.xpose.msra.mxu0 %v818
        %822 = vmatprep.subr.bf16.mxu0 0
        %823 = vmatpush1.bf16.xpose.msra.mxu0 0
        %824 = vmatprep.subr.bf16.mxu0 0
        %825 = vmatpush1.bf16.xpose.msra.mxu0 0
        %826 = vmatprep.subr.bf16.mxu0 0
        %827 = vmatpush1.bf16.xpose.msra.mxu0 0
        %828 = vmatprep.subr.bf16.mxu0 0
        %829 = vmatpush1.bf16.xpose.msra.mxu0 0
        %830 = vmatprep.subr.bf16.mxu0 0
        %831 = vmatpush1.bf16.xpose.msra.mxu0 0
        %832 = vmatprep.subr.bf16.mxu0 0
        %833 = vmatpush1.bf16.xpose.msra.mxu0 0
        %834 = vmatprep.subr.bf16.mxu0 0
        %835 = vmatpush1.bf16.xpose.msra.mxu0 0
        %836 = vmatprep.subr.bf16.mxu0 0
        %837 = vmatpush1.bf16.xpose.msra.mxu0 0
        %838 = vmatprep.subr.bf16.mxu0 0
        %839 = vmatpush1.bf16.xpose.msra.mxu0 0
        %840 = vmatprep.subr.bf16.mxu0 0
        %841 = vmatpush1.bf16.xpose.msra.mxu0 0
        %842 = vmatprep.subr.bf16.mxu0 0
        %843 = vmatpush1.bf16.xpose.msra.mxu0 0
        %844 = vmatprep.subr.bf16.mxu0 0
        %845 = vmatpush1.bf16.xpose.msra.mxu0 0
        %846 = vmatprep.subr.bf16.mxu0 0
        %847 = vmatpush1.bf16.xpose.msra.mxu0 0
        %848 = vmatprep.subr.bf16.mxu0 0
        %849 = vmatpush1.bf16.xpose.msra.mxu0 0
        %850 = vmatprep.subr.bf16.mxu0 0
        %851 = vmatpush1.bf16.xpose.msra.mxu0 0
        %852 = vmatprep.mubr.bf16.mxu0 0
        %853 = vmatmul.mubr.bf16.gmra.mrb[0].mxu0 %v815
        %v854 = vpop.f32.mrb[0].mxu0
        %v855 = vadd.f32 0.0, %v854
        %v856 = vpop.f32.mrb[0].mxu0
        %v857 = vpop.f32.mrb[0].mxu0
        %v858 = vpop.f32.mrb[0].mxu0
        %859 = vdwg.mxu0
        %v861 = vsel %vm767, %v763, 0
        %v864 = vsel %vm767, %v699, 0
        %866 = vmatprep.subr.bf16.mxu0 0
        %867 = vmatpush1.bf16.xpose.msra.mxu0 %v864
        %868 = vmatprep.subr.bf16.mxu0 0
        %869 = vmatpush1.bf16.xpose.msra.mxu0 0
        %870 = vmatprep.subr.bf16.mxu0 0
        %871 = vmatpush1.bf16.xpose.msra.mxu0 0
        %872 = vmatprep.subr.bf16.mxu0 0
        %873 = vmatpush1.bf16.xpose.msra.mxu0 0
        %874 = vmatprep.subr.bf16.mxu0 0
        %875 = vmatpush1.bf16.xpose.msra.mxu0 0
        %876 = vmatprep.subr.bf16.mxu0 0
        %877 = vmatpush1.bf16.xpose.msra.mxu0 0
        %878 = vmatprep.subr.bf16.mxu0 0
        %879 = vmatpush1.bf16.xpose.msra.mxu0 0
        %880 = vmatprep.subr.bf16.mxu0 0
        %881 = vmatpush1.bf16.xpose.msra.mxu0 0
        %882 = vmatprep.subr.bf16.mxu0 0
        %883 = vmatpush1.bf16.xpose.msra.mxu0 0
        %884 = vmatprep.subr.bf16.mxu0 0
        %885 = vmatpush1.bf16.xpose.msra.mxu0 0
        %886 = vmatprep.subr.bf16.mxu0 0
        %887 = vmatpush1.bf16.xpose.msra.mxu0 0
        %888 = vmatprep.subr.bf16.mxu0 0
        %889 = vmatpush1.bf16.xpose.msra.mxu0 0
        %890 = vmatprep.subr.bf16.mxu0 0
        %891 = vmatpush1.bf16.xpose.msra.mxu0 0
        %892 = vmatprep.subr.bf16.mxu0 0
        %893 = vmatpush1.bf16.xpose.msra.mxu0 0
        %894 = vmatprep.subr.bf16.mxu0 0
        %895 = vmatpush1.bf16.xpose.msra.mxu0 0
        %896 = vmatprep.subr.bf16.mxu0 0
        %897 = vmatpush1.bf16.xpose.msra.mxu0 0
        %898 = vmatprep.mubr.bf16.mxu0 0
        %899 = vmatmul.mubr.bf16.gmra.mrb[0].mxu0 %v861
        %v900 = vpop.f32.mrb[0].mxu0
        %v901 = vadd.f32 0.0, %v900
        %v902 = vpop.f32.mrb[0].mxu0
        %v903 = vpop.f32.mrb[0].mxu0
        %v904 = vpop.f32.mrb[0].mxu0
        %905 = vdwg.mxu0
        %v907 = vsel %vm767, %v766, 0
        %v910 = vsel %vm767, %v700, 0
        %912 = vmatprep.subr.bf16.mxu0 0
        %913 = vmatpush1.bf16.xpose.msra.mxu0 %v910
        %914 = vmatprep.subr.bf16.mxu0 0
        %915 = vmatpush1.bf16.xpose.msra.mxu0 0
        %916 = vmatprep.subr.bf16.mxu0 0
        %917 = vmatpush1.bf16.xpose.msra.mxu0 0
        %918 = vmatprep.subr.bf16.mxu0 0
        %919 = vmatpush1.bf16.xpose.msra.mxu0 0
        %920 = vmatprep.subr.bf16.mxu0 0
        %921 = vmatpush1.bf16.xpose.msra.mxu0 0
        %922 = vmatprep.subr.bf16.mxu0 0
        %923 = vmatpush1.bf16.xpose.msra.mxu0 0
        %924 = vmatprep.subr.bf16.mxu0 0
        %925 = vmatpush1.bf16.xpose.msra.mxu0 0
        %926 = vmatprep.subr.bf16.mxu0 0
        %927 = vmatpush1.bf16.xpose.msra.mxu0 0
        %928 = vmatprep.subr.bf16.mxu0 0
        %929 = vmatpush1.bf16.xpose.msra.mxu0 0
        %930 = vmatprep.subr.bf16.mxu0 0
        %931 = vmatpush1.bf16.xpose.msra.mxu0 0
        %932 = vmatprep.subr.bf16.mxu0 0
        %933 = vmatpush1.bf16.xpose.msra.mxu0 0
        %934 = vmatprep.subr.bf16.mxu0 0
        %935 = vmatpush1.bf16.xpose.msra.mxu0 0
        %936 = vmatprep.subr.bf16.mxu0 0
        %937 = vmatpush1.bf16.xpose.msra.mxu0 0
        %938 = vmatprep.subr.bf16.mxu0 0
        %939 = vmatpush1.bf16.xpose.msra.mxu0 0
        %940 = vmatprep.subr.bf16.mxu0 0
        %941 = vmatpush1.bf16.xpose.msra.mxu0 0
        %942 = vmatprep.subr.bf16.mxu0 0
        %943 = vmatpush1.bf16.xpose.msra.mxu0 0
        %944 = vmatprep.mubr.bf16.mxu0 0
        %945 = vmatmul.mubr.bf16.gmra.mrb[0].mxu0 %v907
        %v946 = vpop.f32.mrb[0].mxu0
        %v947 = vadd.f32 0.0, %v946
        %v948 = vpop.f32.mrb[0].mxu0
        %v949 = vpop.f32.mrb[0].mxu0
        %v950 = vpop.f32.mrb[0].mxu0
        %951 = vdwg.mxu0
        %v952 = vsel %vm767, %v809, -inf
        %953 = vmax.xlane.f32.xlu0 %v952
        %v954 = vpop.xlane.xlu0 %953
        %v955 = vsel %vm767, %v855, -inf
        %956 = vmax.xlane.f32.xlu0 %v955
        %v957 = vpop.xlane.xlu0 %956
        %v958 = vsel %vm767, %v901, -inf
        %959 = vmax.xlane.f32.xlu0 %v958
        %v960 = vpop.xlane.xlu0 %959
        %v961 = vsel %vm767, %v947, -inf
        %962 = vmax.xlane.f32.xlu0 %v961
        %v963 = vpop.xlane.xlu0 %962
        %v964 = vsub.f32 %v809, %v954
        %v965 = vsub.f32 %v855, %v957
        %v966 = vsub.f32 %v901, %v960
        %v967 = vsub.f32 %v947, %v963
        %v968 = vmul.f32 %v964, 1.442695
        %v969 = vpow.pop %v968
        %v970 = vmul.f32 %v965, 1.442695
        %v971 = vpow.pop %v970
        %v972 = vmul.f32 %v966, 1.442695
        %v973 = vpow.pop %v972
        %v974 = vmul.f32 %v967, 1.442695
        %v975 = vpow.pop %v974
        %v976 = vsel %vm767, %v969, 0.0
        %977 = vadd.xlane.f32.xlu0 %v976
        %v978 = vpop.xlane.xlu0 %977
        %v979 = vsel %vm767, %v971, 0.0
        %980 = vadd.xlane.f32.xlu0 %v979
        %v981 = vpop.xlane.xlu0 %980
        %v982 = vsel %vm767, %v973, 0.0
        %983 = vadd.xlane.f32.xlu0 %v982
        %v984 = vpop.xlane.xlu0 %983
        %v985 = vsel %vm767, %v975, 0.0
        %986 = vadd.xlane.f32.xlu0 %v985
        %v987 = vpop.xlane.xlu0 %986
        %v988 = vrcp.pop %v978
        %v989 = vmul.f32 %v969, %v988
        %v990 = vrcp.pop %v981
        %v991 = vmul.f32 %v971, %v990
        %v992 = vrcp.pop %v984
        %v993 = vmul.f32 %v973, %v992
        %v994 = vrcp.pop %v987
        %v995 = vmul.f32 %v975, %v994
        %v996 = vpack.c.bf16 %v989, %v989
        %v997 = vpack.c.bf16 %v991, %v991
        %v998 = vpack.c.bf16 %v993, %v993
        %v999 = vpack.c.bf16 %v995, %v995
        %vm1000 = vcmask 60416
        %1001 = vst.msk [vmem:[%s523] sm:$0xf] %vm1000, %v996
        %1002 = vst.msk [vmem:[%s523 + $0x4] sm:$0xf] %vm1000, %v997
        %1003 = vst.msk [vmem:[%s523 + $0x8] sm:$0xf] %vm1000, %v998
        %1004 = vst.msk [vmem:[%s523 + $0xc] sm:$0xf] %vm1000, %v999
        %1005 = vxpose.xlu0.c.b16.start [1/8] %v701, 128
        %1006 = vxpose.xlu0.c.b16.cont [2/8] 0, 128
        %1007 = vxpose.xlu0.c.b16.cont [3/8] 0, 128
        %1008 = vxpose.xlu0.c.b16.cont [4/8] 0, 128
        %1009 = vxpose.xlu0.c.b16.cont [5/8] 0, 128
        %1010 = vxpose.xlu0.c.b16.cont [6/8] 0, 128
        %1011 = vxpose.xlu0.c.b16.cont [7/8] 0, 128
        %1012 = vxpose.xlu0.c.b16.end [8/8] 0, 128
        %v1013 = vpop.trf.xlu0
        %v1014 = vpop.trf.xlu0
        %v1015 = vpop.trf.xlu0
        %v1016 = vpop.trf.xlu0
        %v1017 = vpop.trf.xlu0
        %v1018 = vpop.trf.xlu0
        %v1019 = vpop.trf.xlu0
        %v1020 = vpop.trf.xlu0
        %v1022 = vsel %vm767, %v1013, 0
        %v1025 = vsel %vm767, %v996, 0
        %1027 = vmatprep.subr.bf16.mxu0 0
        %1028 = vmatpush1.bf16.xpose.msra.mxu0 %v1025
        %1029 = vmatprep.subr.bf16.mxu0 0
        %1030 = vmatpush1.bf16.xpose.msra.mxu0 0
        %1031 = vmatprep.subr.bf16.mxu0 0
        %1032 = vmatpush1.bf16.xpose.msra.mxu0 0
        %1033 = vmatprep.subr.bf16.mxu0 0
        %1034 = vmatpush1.bf16.xpose.msra.mxu0 0
        %1035 = vmatprep.subr.bf16.mxu0 0
        %1036 = vmatpush1.bf16.xpose.msra.mxu0 0
        %1037 = vmatprep.subr.bf16.mxu0 0
        %1038 = vmatpush1.bf16.xpose.msra.mxu0 0
        %1039 = vmatprep.subr.bf16.mxu0 0
        %1040 = vmatpush1.bf16.xpose.msra.mxu0 0
        %1041 = vmatprep.subr.bf16.mxu0 0
        %1042 = vmatpush1.bf16.xpose.msra.mxu0 0
        %1043 = vmatprep.subr.bf16.mxu0 0
        %1044 = vmatpush1.bf16.xpose.msra.mxu0 0
        %1045 = vmatprep.subr.bf16.mxu0 0
        %1046 = vmatpush1.bf16.xpose.msra.mxu0 0
        %1047 = vmatprep.subr.bf16.mxu0 0
        %1048 = vmatpush1.bf16.xpose.msra.mxu0 0
        %1049 = vmatprep.subr.bf16.mxu0 0
        %1050 = vmatpush1.bf16.xpose.msra.mxu0 0
        %1051 = vmatprep.subr.bf16.mxu0 0
        %1052 = vmatpush1.bf16.xpose.msra.mxu0 0
        %1053 = vmatprep.subr.bf16.mxu0 0
        %1054 = vmatpush1.bf16.xpose.msra.mxu0 0
        %1055 = vmatprep.subr.bf16.mxu0 0
        %1056 = vmatpush1.bf16.xpose.msra.mxu0 0
        %1057 = vmatprep.subr.bf16.mxu0 0
        %1058 = vmatpush1.bf16.xpose.msra.mxu0 0
        %1059 = vmatprep.mubr.bf16.mxu0 0
        %1060 = vmatmul.mubr.bf16.gmra.mrb[0].mxu0 %v1022
        %v1061 = vpop.f32.mrb[0].mxu0
        %v1062 = vadd.f32 0.0, %v1061
        %v1063 = vpop.f32.mrb[0].mxu0
        %v1064 = vpop.f32.mrb[0].mxu0
        %v1065 = vpop.f32.mrb[0].mxu0
        %1066 = vdwg.mxu0
        %1067 = vxpose.xlu0.c.b16.start [1/8] %v702, 128
        %1068 = vxpose.xlu0.c.b16.cont [2/8] 0, 128
        %1069 = vxpose.xlu0.c.b16.cont [3/8] 0, 128
        %1070 = vxpose.xlu0.c.b16.cont [4/8] 0, 128
        %1071 = vxpose.xlu0.c.b16.cont [5/8] 0, 128
        %1072 = vxpose.xlu0.c.b16.cont [6/8] 0, 128
        %1073 = vxpose.xlu0.c.b16.cont [7/8] 0, 128
        %1074 = vxpose.xlu0.c.b16.end [8/8] 0, 128
        %v1075 = vpop.trf.xlu0
        %v1076 = vpop.trf.xlu0
        %v1077 = vpop.trf.xlu0
        %v1078 = vpop.trf.xlu0
        %v1079 = vpop.trf.xlu0
        %v1080 = vpop.trf.xlu0
        %v1081 = vpop.trf.xlu0
        %v1082 = vpop.trf.xlu0
        %v1084 = vsel %vm767, %v1075, 0
        %v1087 = vsel %vm767, %v997, 0
        %1089 = vmatprep.subr.bf16.mxu0 0
        %1090 = vmatpush1.bf16.xpose.msra.mxu0 %v1087
        %1091 = vmatprep.subr.bf16.mxu0 0
        %1092 = vmatpush1.bf16.xpose.msra.mxu0 0
        %1093 = vmatprep.subr.bf16.mxu0 0
        %1094 = vmatpush1.bf16.xpose.msra.mxu0 0
        %1095 = vmatprep.subr.bf16.mxu0 0
        %1096 = vmatpush1.bf16.xpose.msra.mxu0 0
        %1097 = vmatprep.subr.bf16.mxu0 0
        %1098 = vmatpush1.bf16.xpose.msra.mxu0 0
        %1099 = vmatprep.subr.bf16.mxu0 0
        %1100 = vmatpush1.bf16.xpose.msra.mxu0 0
        %1101 = vmatprep.subr.bf16.mxu0 0
        %1102 = vmatpush1.bf16.xpose.msra.mxu0 0
        %1103 = vmatprep.subr.bf16.mxu0 0
        %1104 = vmatpush1.bf16.xpose.msra.mxu0 0
        %1105 = vmatprep.subr.bf16.mxu0 0
        %1106 = vmatpush1.bf16.xpose.msra.mxu0 0
        %1107 = vmatprep.subr.bf16.mxu0 0
        %1108 = vmatpush1.bf16.xpose.msra.mxu0 0
        %1109 = vmatprep.subr.bf16.mxu0 0
        %1110 = vmatpush1.bf16.xpose.msra.mxu0 0
        %1111 = vmatprep.subr.bf16.mxu0 0
        %1112 = vmatpush1.bf16.xpose.msra.mxu0 0
        %1113 = vmatprep.subr.bf16.mxu0 0
        %1114 = vmatpush1.bf16.xpose.msra.mxu0 0
        %1115 = vmatprep.subr.bf16.mxu0 0
        %1116 = vmatpush1.bf16.xpose.msra.mxu0 0
        %1117 = vmatprep.subr.bf16.mxu0 0
        %1118 = vmatpush1.bf16.xpose.msra.mxu0 0
        %1119 = vmatprep.subr.bf16.mxu0 0
        %1120 = vmatpush1.bf16.xpose.msra.mxu0 0
        %1121 = vmatprep.mubr.bf16.mxu0 0
        %1122 = vmatmul.mubr.bf16.gmra.mrb[0].mxu0 %v1084
        %v1123 = vpop.f32.mrb[0].mxu0
        %v1124 = vadd.f32 0.0, %v1123
        %v1125 = vpop.f32.mrb[0].mxu0
        %v1126 = vpop.f32.mrb[0].mxu0
        %v1127 = vpop.f32.mrb[0].mxu0
        %1128 = vdwg.mxu0
        %1129 = vxpose.xlu0.c.b16.start [1/8] %v703, 128
        %1130 = vxpose.xlu0.c.b16.cont [2/8] 0, 128
        %1131 = vxpose.xlu0.c.b16.cont [3/8] 0, 128
        %1132 = vxpose.xlu0.c.b16.cont [4/8] 0, 128
        %1133 = vxpose.xlu0.c.b16.cont [5/8] 0, 128
        %1134 = vxpose.xlu0.c.b16.cont [6/8] 0, 128
        %1135 = vxpose.xlu0.c.b16.cont [7/8] 0, 128
        %1136 = vxpose.xlu0.c.b16.end [8/8] 0, 128
        %v1137 = vpop.trf.xlu0
        %v1138 = vpop.trf.xlu0
        %v1139 = vpop.trf.xlu0
        %v1140 = vpop.trf.xlu0
        %v1141 = vpop.trf.xlu0
        %v1142 = vpop.trf.xlu0
        %v1143 = vpop.trf.xlu0
        %v1144 = vpop.trf.xlu0
        %v1146 = vsel %vm767, %v1137, 0
        %v1149 = vsel %vm767, %v998, 0
        %1151 = vmatprep.subr.bf16.mxu0 0
        %1152 = vmatpush1.bf16.xpose.msra.mxu0 %v1149
        %1153 = vmatprep.subr.bf16.mxu0 0
        %1154 = vmatpush1.bf16.xpose.msra.mxu0 0
        %1155 = vmatprep.subr.bf16.mxu0 0
        %1156 = vmatpush1.bf16.xpose.msra.mxu0 0
        %1157 = vmatprep.subr.bf16.mxu0 0
        %1158 = vmatpush1.bf16.xpose.msra.mxu0 0
        %1159 = vmatprep.subr.bf16.mxu0 0
        %1160 = vmatpush1.bf16.xpose.msra.mxu0 0
        %1161 = vmatprep.subr.bf16.mxu0 0
        %1162 = vmatpush1.bf16.xpose.msra.mxu0 0
        %1163 = vmatprep.subr.bf16.mxu0 0
        %1164 = vmatpush1.bf16.xpose.msra.mxu0 0
        %1165 = vmatprep.subr.bf16.mxu0 0
        %1166 = vmatpush1.bf16.xpose.msra.mxu0 0
        %1167 = vmatprep.subr.bf16.mxu0 0
        %1168 = vmatpush1.bf16.xpose.msra.mxu0 0
        %1169 = vmatprep.subr.bf16.mxu0 0
        %1170 = vmatpush1.bf16.xpose.msra.mxu0 0
        %1171 = vmatprep.subr.bf16.mxu0 0
        %1172 = vmatpush1.bf16.xpose.msra.mxu0 0
        %1173 = vmatprep.subr.bf16.mxu0 0
        %1174 = vmatpush1.bf16.xpose.msra.mxu0 0
        %1175 = vmatprep.subr.bf16.mxu0 0
        %1176 = vmatpush1.bf16.xpose.msra.mxu0 0
        %1177 = vmatprep.subr.bf16.mxu0 0
        %1178 = vmatpush1.bf16.xpose.msra.mxu0 0
        %1179 = vmatprep.subr.bf16.mxu0 0
        %1180 = vmatpush1.bf16.xpose.msra.mxu0 0
        %1181 = vmatprep.subr.bf16.mxu0 0
        %1182 = vmatpush1.bf16.xpose.msra.mxu0 0
        %1183 = vmatprep.mubr.bf16.mxu0 0
        %1184 = vmatmul.mubr.bf16.gmra.mrb[0].mxu0 %v1146
        %v1185 = vpop.f32.mrb[0].mxu0
        %v1186 = vadd.f32 0.0, %v1185
        %v1187 = vpop.f32.mrb[0].mxu0
        %v1188 = vpop.f32.mrb[0].mxu0
        %v1189 = vpop.f32.mrb[0].mxu0
        %1190 = vdwg.mxu0
        %1191 = vxpose.xlu0.c.b16.start [1/8] %v704, 128
        %1192 = vxpose.xlu0.c.b16.cont [2/8] 0, 128
        %1193 = vxpose.xlu0.c.b16.cont [3/8] 0, 128
        %1194 = vxpose.xlu0.c.b16.cont [4/8] 0, 128
        %1195 = vxpose.xlu0.c.b16.cont [5/8] 0, 128
        %1196 = vxpose.xlu0.c.b16.cont [6/8] 0, 128
        %1197 = vxpose.xlu0.c.b16.cont [7/8] 0, 128
        %1198 = vxpose.xlu0.c.b16.end [8/8] 0, 128
        %v1199 = vpop.trf.xlu0
        %v1200 = vpop.trf.xlu0
        %v1201 = vpop.trf.xlu0
        %v1202 = vpop.trf.xlu0
        %v1203 = vpop.trf.xlu0
        %v1204 = vpop.trf.xlu0
        %v1205 = vpop.trf.xlu0
        %v1206 = vpop.trf.xlu0
        %v1208 = vsel %vm767, %v1199, 0
        %v1211 = vsel %vm767, %v999, 0
        %1213 = vmatprep.subr.bf16.mxu0 0
        %1214 = vmatpush1.bf16.xpose.msra.mxu0 %v1211
        %1215 = vmatprep.subr.bf16.mxu0 0
        %1216 = vmatpush1.bf16.xpose.msra.mxu0 0
        %1217 = vmatprep.subr.bf16.mxu0 0
        %1218 = vmatpush1.bf16.xpose.msra.mxu0 0
        %1219 = vmatprep.subr.bf16.mxu0 0
        %1220 = vmatpush1.bf16.xpose.msra.mxu0 0
        %1221 = vmatprep.subr.bf16.mxu0 0
        %1222 = vmatpush1.bf16.xpose.msra.mxu0 0
        %1223 = vmatprep.subr.bf16.mxu0 0
        %1224 = vmatpush1.bf16.xpose.msra.mxu0 0
        %1225 = vmatprep.subr.bf16.mxu0 0
        %1226 = vmatpush1.bf16.xpose.msra.mxu0 0
        %1227 = vmatprep.subr.bf16.mxu0 0
        %1228 = vmatpush1.bf16.xpose.msra.mxu0 0
        %1229 = vmatprep.subr.bf16.mxu0 0
        %1230 = vmatpush1.bf16.xpose.msra.mxu0 0
        %1231 = vmatprep.subr.bf16.mxu0 0
        %1232 = vmatpush1.bf16.xpose.msra.mxu0 0
        %1233 = vmatprep.subr.bf16.mxu0 0
        %1234 = vmatpush1.bf16.xpose.msra.mxu0 0
        %1235 = vmatprep.subr.bf16.mxu0 0
        %1236 = vmatpush1.bf16.xpose.msra.mxu0 0
        %1237 = vmatprep.subr.bf16.mxu0 0
        %1238 = vmatpush1.bf16.xpose.msra.mxu0 0
        %1239 = vmatprep.subr.bf16.mxu0 0
        %1240 = vmatpush1.bf16.xpose.msra.mxu0 0
        %1241 = vmatprep.subr.bf16.mxu0 0
        %1242 = vmatpush1.bf16.xpose.msra.mxu0 0
        %1243 = vmatprep.subr.bf16.mxu0 0
        %1244 = vmatpush1.bf16.xpose.msra.mxu0 0
        %1245 = vmatprep.mubr.bf16.mxu0 0
        %1246 = vmatmul.mubr.bf16.gmra.mrb[0].mxu0 %v1208
        %v1247 = vpop.f32.mrb[0].mxu0
        %v1248 = vadd.f32 0.0, %v1247
        %v1249 = vpop.f32.mrb[0].mxu0
        %v1250 = vpop.f32.mrb[0].mxu0
        %v1251 = vpop.f32.mrb[0].mxu0
        %1252 = vdwg.mxu0
        %1253 = vxpose.xlu0.b32.start [1/16] %v1062, 128
        %1254 = vxpose.xlu0.b32.cont [2/16] 0.0, 128
        %1255 = vxpose.xlu0.b32.cont [3/16] 0.0, 128
        %1256 = vxpose.xlu0.b32.cont [4/16] 0.0, 128
        %1257 = vxpose.xlu0.b32.cont [5/16] 0.0, 128
        %1258 = vxpose.xlu0.b32.cont [6/16] 0.0, 128
        %1259 = vxpose.xlu0.b32.cont [7/16] 0.0, 128
        %1260 = vxpose.xlu0.b32.cont [8/16] 0.0, 128
        %1261 = vxpose.xlu0.b32.cont [9/16] 0.0, 128
        %1262 = vxpose.xlu0.b32.cont [10/16] 0.0, 128
        %1263 = vxpose.xlu0.b32.cont [11/16] 0.0, 128
        %1264 = vxpose.xlu0.b32.cont [12/16] 0.0, 128
        %1265 = vxpose.xlu0.b32.cont [13/16] 0.0, 128
        %1266 = vxpose.xlu0.b32.cont [14/16] 0.0, 128
        %1267 = vxpose.xlu0.b32.cont [15/16] 0.0, 128
        %1268 = vxpose.xlu0.b32.end [16/16] 0.0, 128
        %v1269 = vpop.trf.xlu0
        %v1270 = vpop.trf.xlu0
        %v1271 = vpop.trf.xlu0
        %v1272 = vpop.trf.xlu0
        %v1273 = vpop.trf.xlu0
        %v1274 = vpop.trf.xlu0
        %v1275 = vpop.trf.xlu0
        %v1276 = vpop.trf.xlu0
        %v1277 = vpop.trf.xlu0
        %v1278 = vpop.trf.xlu0
        %v1279 = vpop.trf.xlu0
        %v1280 = vpop.trf.xlu0
        %v1281 = vpop.trf.xlu0
        %v1282 = vpop.trf.xlu0
        %v1283 = vpop.trf.xlu0
        %v1284 = vpop.trf.xlu0
        %1285 = vxpose.xlu0.b32.start [1/16] %v1124, 128
        %1286 = vxpose.xlu0.b32.cont [2/16] 0.0, 128
        %1287 = vxpose.xlu0.b32.cont [3/16] 0.0, 128
        %1288 = vxpose.xlu0.b32.cont [4/16] 0.0, 128
        %1289 = vxpose.xlu0.b32.cont [5/16] 0.0, 128
        %1290 = vxpose.xlu0.b32.cont [6/16] 0.0, 128
        %1291 = vxpose.xlu0.b32.cont [7/16] 0.0, 128
        %1292 = vxpose.xlu0.b32.cont [8/16] 0.0, 128
        %1293 = vxpose.xlu0.b32.cont [9/16] 0.0, 128
        %1294 = vxpose.xlu0.b32.cont [10/16] 0.0, 128
        %1295 = vxpose.xlu0.b32.cont [11/16] 0.0, 128
        %1296 = vxpose.xlu0.b32.cont [12/16] 0.0, 128
        %1297 = vxpose.xlu0.b32.cont [13/16] 0.0, 128
        %1298 = vxpose.xlu0.b32.cont [14/16] 0.0, 128
        %1299 = vxpose.xlu0.b32.cont [15/16] 0.0, 128
        %1300 = vxpose.xlu0.b32.end [16/16] 0.0, 128
        %v1301 = vpop.trf.xlu0
        %v1302 = vpop.trf.xlu0
        %v1303 = vpop.trf.xlu0
        %v1304 = vpop.trf.xlu0
        %v1305 = vpop.trf.xlu0
        %v1306 = vpop.trf.xlu0
        %v1307 = vpop.trf.xlu0
        %v1308 = vpop.trf.xlu0
        %v1309 = vpop.trf.xlu0
        %v1310 = vpop.trf.xlu0
        %v1311 = vpop.trf.xlu0
        %v1312 = vpop.trf.xlu0
        %v1313 = vpop.trf.xlu0
        %v1314 = vpop.trf.xlu0
        %v1315 = vpop.trf.xlu0
        %v1316 = vpop.trf.xlu0
        %1317 = vxpose.xlu0.b32.start [1/16] %v1186, 128
        %1318 = vxpose.xlu0.b32.cont [2/16] 0.0, 128
        %1319 = vxpose.xlu0.b32.cont [3/16] 0.0, 128
        %1320 = vxpose.xlu0.b32.cont [4/16] 0.0, 128
        %1321 = vxpose.xlu0.b32.cont [5/16] 0.0, 128
        %1322 = vxpose.xlu0.b32.cont [6/16] 0.0, 128
        %1323 = vxpose.xlu0.b32.cont [7/16] 0.0, 128
        %1324 = vxpose.xlu0.b32.cont [8/16] 0.0, 128
        %1325 = vxpose.xlu0.b32.cont [9/16] 0.0, 128
        %1326 = vxpose.xlu0.b32.cont [10/16] 0.0, 128
        %1327 = vxpose.xlu0.b32.cont [11/16] 0.0, 128
        %1328 = vxpose.xlu0.b32.cont [12/16] 0.0, 128
        %1329 = vxpose.xlu0.b32.cont [13/16] 0.0, 128
        %1330 = vxpose.xlu0.b32.cont [14/16] 0.0, 128
        %1331 = vxpose.xlu0.b32.cont [15/16] 0.0, 128
        %1332 = vxpose.xlu0.b32.end [16/16] 0.0, 128
        %v1333 = vpop.trf.xlu0
        %v1334 = vpop.trf.xlu0
        %v1335 = vpop.trf.xlu0
        %v1336 = vpop.trf.xlu0
        %v1337 = vpop.trf.xlu0
        %v1338 = vpop.trf.xlu0
        %v1339 = vpop.trf.xlu0
        %v1340 = vpop.trf.xlu0
        %v1341 = vpop.trf.xlu0
        %v1342 = vpop.trf.xlu0
        %v1343 = vpop.trf.xlu0
        %v1344 = vpop.trf.xlu0
        %v1345 = vpop.trf.xlu0
        %v1346 = vpop.trf.xlu0
        %v1347 = vpop.trf.xlu0
        %v1348 = vpop.trf.xlu0
        %1349 = vxpose.xlu0.b32.start [1/16] %v1248, 128
        %1350 = vxpose.xlu0.b32.cont [2/16] 0.0, 128
        %1351 = vxpose.xlu0.b32.cont [3/16] 0.0, 128
        %1352 = vxpose.xlu0.b32.cont [4/16] 0.0, 128
        %1353 = vxpose.xlu0.b32.cont [5/16] 0.0, 128
        %1354 = vxpose.xlu0.b32.cont [6/16] 0.0, 128
        %1355 = vxpose.xlu0.b32.cont [7/16] 0.0, 128
        %1356 = vxpose.xlu0.b32.cont [8/16] 0.0, 128
        %1357 = vxpose.xlu0.b32.cont [9/16] 0.0, 128
        %1358 = vxpose.xlu0.b32.cont [10/16] 0.0, 128
        %1359 = vxpose.xlu0.b32.cont [11/16] 0.0, 128
        %1360 = vxpose.xlu0.b32.cont [12/16] 0.0, 128
        %1361 = vxpose.xlu0.b32.cont [13/16] 0.0, 128
        %1362 = vxpose.xlu0.b32.cont [14/16] 0.0, 128
        %1363 = vxpose.xlu0.b32.cont [15/16] 0.0, 128
        %1364 = vxpose.xlu0.b32.end [16/16] 0.0, 128
        %v1365 = vpop.trf.xlu0
        %v1366 = vpop.trf.xlu0
        %v1367 = vpop.trf.xlu0
        %v1368 = vpop.trf.xlu0
        %v1369 = vpop.trf.xlu0
        %v1370 = vpop.trf.xlu0
        %v1371 = vpop.trf.xlu0
        %v1372 = vpop.trf.xlu0
        %v1373 = vpop.trf.xlu0
        %v1374 = vpop.trf.xlu0
        %v1375 = vpop.trf.xlu0
        %v1376 = vpop.trf.xlu0
        %v1377 = vpop.trf.xlu0
        %v1378 = vpop.trf.xlu0
        %v1379 = vpop.trf.xlu0
        %v1380 = vpop.trf.xlu0
        %v1381 = vcombine.low %v1269, %v1333
        %v1382 = vcombine.high %v1269, %v1333
        %v1384 = vunpack.c.l.s4 1983009808
        %v1385 = vunpack.c.0.s8 %v1384
        %v1386 = vlaneseq
        %v1387 = vshrl.u32 %v1386, 7
        %v1388 = vsub.s32 %v1385, %v1387
        %v1389 = vrot.slane %v1381, %v1388
        %v1391 = vunpack.c.l.s4 1983009808
        %v1392 = vunpack.c.0.s8 %v1391
        %v1393 = vlaneseq
        %v1394 = vshrl.u32 %v1393, 7
        %v1395 = vsub.s32 %v1392, %v1394
        %v1396 = vrot.slane %v1382, %v1395
        %v1397 = vcombine.low %v1301, %v1365
        %v1398 = vcombine.high %v1301, %v1365
        %v1400 = vunpack.c.l.s4 1983009808
        %v1401 = vunpack.c.0.s8 %v1400
        %v1402 = vlaneseq
        %v1403 = vshrl.u32 %v1402, 7
        %v1404 = vsub.s32 %v1401, %v1403
        %v1405 = vrot.slane %v1397, %v1404
        %v1407 = vunpack.c.l.s4 1983009808
        %v1408 = vunpack.c.0.s8 %v1407
        %v1409 = vlaneseq
        %v1410 = vshrl.u32 %v1409, 7
        %v1411 = vsub.s32 %v1408, %v1410
        %v1412 = vrot.slane %v1398, %v1411
        %v1413 = vcombine.low %v1389, %v1405
        %v1414 = vcombine.high %v1389, %v1405
        %v1416 = vunpack.c.l.s4 1934713408
        %v1417 = vunpack.c.0.s8 %v1416
        %v1418 = vlaneseq
        %v1419 = vshrl.u32 %v1418, 7
        %v1420 = vsub.s32 %v1417, %v1419
        %v1421 = vrot.slane %v1413, %v1420
        %v1423 = vunpack.c.l.s4 1934713408
        %v1424 = vunpack.c.0.s8 %v1423
        %v1425 = vlaneseq
        %v1426 = vshrl.u32 %v1425, 7
        %v1427 = vsub.s32 %v1424, %v1426
        %v1428 = vrot.slane %v1414, %v1427
        %v1429 = vcombine.low %v1396, %v1412
        %v1430 = vcombine.high %v1396, %v1412
        %v1432 = vunpack.c.l.s4 1934713408
        %v1433 = vunpack.c.0.s8 %v1432
        %v1434 = vlaneseq
        %v1435 = vshrl.u32 %v1434, 7
        %v1436 = vsub.s32 %v1433, %v1435
        %v1437 = vrot.slane %v1429, %v1436
        %v1439 = vunpack.c.l.s4 1934713408
        %v1440 = vunpack.c.0.s8 %v1439
        %v1441 = vlaneseq
        %v1442 = vshrl.u32 %v1441, 7
        %v1443 = vsub.s32 %v1440, %v1442
        %v1444 = vrot.slane %v1430, %v1443
        %v1445 = vcombine.high %v1421, 0.0
        %v1446 = vcombine.high %v1428, 0.0
        %v1447 = vcombine.high %v1437, 0.0
        %v1448 = vcombine.high %v1444, 0.0
        %v1449 = vcombine.low %v1421, %v1428
        %v1451 = vunpack.c.l.s4 1983009808
        %v1452 = vunpack.c.0.s8 %v1451
        %v1453 = vlaneseq
        %v1454 = vshrl.u32 %v1453, 7
        %v1455 = vsub.s32 %v1452, %v1454
        %v1456 = vrot.slane %v1449, %v1455
        %v1457 = vcombine.low %v1445, %v1446
        %v1459 = vunpack.c.l.s4 1983009808
        %v1460 = vunpack.c.0.s8 %v1459
        %v1461 = vlaneseq
        %v1462 = vshrl.u32 %v1461, 7
        %v1463 = vsub.s32 %v1460, %v1462
        %v1464 = vrot.slane %v1457, %v1463
        %v1465 = vcombine.low %v1437, %v1444
        %v1467 = vunpack.c.l.s4 1983009808
        %v1468 = vunpack.c.0.s8 %v1467
        %v1469 = vlaneseq
        %v1470 = vshrl.u32 %v1469, 7
        %v1471 = vsub.s32 %v1468, %v1470
        %v1472 = vrot.slane %v1465, %v1471
        %v1473 = vcombine.low %v1447, %v1448
        %v1475 = vunpack.c.l.s4 1983009808
        %v1476 = vunpack.c.0.s8 %v1475
        %v1477 = vlaneseq
        %v1478 = vshrl.u32 %v1477, 7
        %v1479 = vsub.s32 %v1476, %v1478
        %v1480 = vrot.slane %v1473, %v1479
        %v1481 = vcombine.low %v1456, %v1464
        %v1482 = vcombine.high %v1456, %v1464
        %v1484 = vunpack.c.l.s4 1934713408
        %v1485 = vunpack.c.0.s8 %v1484
        %v1486 = vlaneseq
        %v1487 = vshrl.u32 %v1486, 7
        %v1488 = vsub.s32 %v1485, %v1487
        %v1489 = vrot.slane %v1481, %v1488
        %v1491 = vunpack.c.l.s4 1934713408
        %v1492 = vunpack.c.0.s8 %v1491
        %v1493 = vlaneseq
        %v1494 = vshrl.u32 %v1493, 7
        %v1495 = vsub.s32 %v1492, %v1494
        %v1496 = vrot.slane %v1482, %v1495
        %v1497 = vcombine.low %v1472, %v1480
        %v1498 = vcombine.high %v1472, %v1480
        %v1500 = vunpack.c.l.s4 1934713408
        %v1501 = vunpack.c.0.s8 %v1500
        %v1502 = vlaneseq
        %v1503 = vshrl.u32 %v1502, 7
        %v1504 = vsub.s32 %v1501, %v1503
        %v1505 = vrot.slane %v1497, %v1504
        %v1507 = vunpack.c.l.s4 1934713408
        %v1508 = vunpack.c.0.s8 %v1507
        %v1509 = vlaneseq
        %v1510 = vshrl.u32 %v1509, 7
        %v1511 = vsub.s32 %v1508, %v1510
        %v1512 = vrot.slane %v1498, %v1511
        %v1513 = vcombine.low %v1489, %v1505
        %v1514 = vcombine.high %v1489, %v1505
        %v1515 = vcombine.low %v1496, %v1512
        %v1516 = vcombine.high %v1496, %v1512
        %1518 = vrot.lane.b32.xlu0 %v1514, 8
        %v1519 = vpop.permute.xlu0 %1518
        %1522 = vrot.lane.b32.xlu0 %v1515, 16
        %v1523 = vpop.permute.xlu0 %1522
        %1526 = vrot.lane.b32.xlu0 %v1516, 24
        %v1527 = vpop.permute.xlu0 %1526
        %v1529 = vsel %vm767, %v1513, %v1519
        %vm1530 = vcmask 130048
        %v1531 = vsel %vm1530, %v1529, %v1523
        %vm1532 = vcmask 195584
        %v1533 = vsel %vm1532, %v1531, %v1527
        %v1534 = vadd.f32 %v542, %v1533
        %v1535 = vsel %vm567, %v1534, 0.0
        %1536 = vadd.xlane.f32.xlu0 %v1535
        %v1537 = vpop.xlane.xlu0 %1536
        %v1538 = vrcp.pop 32.0
        %v1539 = vmul.f32 %v1537, %v1538
        %v1540 = vsub.f32 %v1534, %v1539
        %v1541 = vmul.f32 %v1540, %v1540
        %v1542 = vsel %vm567, %v1541, 0.0
        %1543 = vadd.xlane.f32.xlu0 %v1542
        %v1544 = vpop.xlane.xlu0 %1543
        %v1545 = vmul.f32 %v1544, %v1538
        %v1546 = vadd.f32 %v1545, 1e-05
        %v1547 = vrsqrt.pop %v1546
        %v1548 = vmul.f32 %v1540, %v1547
        %v1549 = vld [vmem:[%s5] sm:$0x1]
        %v1551 = vlaneseq
        %v1552 = vshrl.u32 %v1551, 7
        %v1553 = vsub.s32 0, %v1552
        %v1554 = vrot.slane %v1549, %v1553
        %v1556 = vmul.f32 %v1548, %v1554
        %v1557 = vld [vmem:[%s6] sm:$0x1]
        %v1559 = vlaneseq
        %v1560 = vshrl.u32 %v1559, 7
        %v1561 = vsub.s32 0, %v1560
        %v1562 = vrot.slane %v1557, %v1561
        %v1564 = vadd.f32 %v1556, %v1562
        %v1565 = vpack.c.bf16 %v1564, %v1564
        %v1566 = vld [vmem:[%s7] sm:$0xf]
        %v1567 = vld [vmem:[%s7 + $0x4] sm:$0xf]
        %v1568 = vld [vmem:[%s7 + $0x8] sm:$0xf]
        %v1569 = vld [vmem:[%s7 + $0xc] sm:$0xf]
        %v1570 = vld [vmem:[%s8] sm:$0x1]
        %v1572 = vlaneseq
        %v1573 = vshrl.u32 %v1572, 7
        %v1574 = vsub.s32 0, %v1573
        %v1575 = vrot.slane %v1570, %v1574
        %v1581 = vunpack.c.l.b16 %v1566
        %v1582 = vunpack.c.l.b16 %v1567
        %v1583 = vunpack.c.l.b16 %v1568
        %v1584 = vunpack.c.l.b16 %v1569
        %v1585 = vpack.c.b16 %v1582, %v1581
        %v1586 = vpack.c.b16 %v1584, %v1583
        %v1590 = vsel %vm567, %v1565, 0
        %1592 = vmatprep.subr.bf16.mxu0 0
        %1593 = vmatpush1.bf16.msra.mxu0 %v1585
        %1594 = vmatprep.subr.bf16.mxu0 0
        %1595 = vmatpush1.bf16.msra.mxu0 %v1586
        %1596 = vmatprep.subr.bf16.mxu0 0
        %1597 = vmatpush1.bf16.msra.mxu0 0
        %1598 = vmatprep.subr.bf16.mxu0 0
        %1599 = vmatpush1.bf16.msra.mxu0 0
        %1600 = vmatprep.subr.bf16.mxu0 0
        %1601 = vmatpush1.bf16.msra.mxu0 0
        %1602 = vmatprep.subr.bf16.mxu0 0
        %1603 = vmatpush1.bf16.msra.mxu0 0
        %1604 = vmatprep.subr.bf16.mxu0 0
        %1605 = vmatpush1.bf16.msra.mxu0 0
        %1606 = vmatprep.subr.bf16.mxu0 0
        %1607 = vmatpush1.bf16.msra.mxu0 0
        %1608 = vmatprep.subr.bf16.mxu0 0
        %1609 = vmatpush1.bf16.msra.mxu0 0
        %1610 = vmatprep.subr.bf16.mxu0 0
        %1611 = vmatpush1.bf16.msra.mxu0 0
        %1612 = vmatprep.subr.bf16.mxu0 0
        %1613 = vmatpush1.bf16.msra.mxu0 0
        %1614 = vmatprep.subr.bf16.mxu0 0
        %1615 = vmatpush1.bf16.msra.mxu0 0
        %1616 = vmatprep.subr.bf16.mxu0 0
        %1617 = vmatpush1.bf16.msra.mxu0 0
        %1618 = vmatprep.subr.bf16.mxu0 0
        %1619 = vmatpush1.bf16.msra.mxu0 0
        %1620 = vmatprep.subr.bf16.mxu0 0
        %1621 = vmatpush1.bf16.msra.mxu0 0
        %1622 = vmatprep.subr.bf16.mxu0 0
        %1623 = vmatpush1.bf16.msra.mxu0 0
        %1624 = vmatprep.mubr.bf16.mxu0 0
        %1625 = vmatmul.mubr.bf16.gmra.mrb[0].mxu0 %v1590
        %v1626 = vpop.f32.mrb[0].mxu0
        %v1627 = vadd.f32 %v1575, %v1626
        %v1628 = vpop.f32.mrb[0].mxu0
        %v1629 = vpop.f32.mrb[0].mxu0
        %v1630 = vpop.f32.mrb[0].mxu0
        %1631 = vdwg.mxu0
        %v1632 = vmax.f32 %v1627, 0.0
        %v1633 = vpack.c.bf16 %v1632, %v1632
        %v1634 = vld [vmem:[%s9] sm:$0xf]
        %v1635 = vld [vmem:[%s9 + $0x4] sm:$0xf]
        %v1636 = vld [vmem:[%s9 + $0x8] sm:$0xf]
        %v1637 = vld [vmem:[%s9 + $0xc] sm:$0xf]
        %v1638 = vld [vmem:[%s9 + $0x10] sm:$0xf]
        %v1639 = vld [vmem:[%s9 + $0x14] sm:$0xf]
        %v1640 = vld [vmem:[%s9 + $0x18] sm:$0xf]
        %v1641 = vld [vmem:[%s9 + $0x1c] sm:$0xf]
        %v1642 = vld [vmem:[%s10] sm:$0x1]
        %v1644 = vlaneseq
        %v1645 = vshrl.u32 %v1644, 7
        %v1646 = vsub.s32 0, %v1645
        %v1647 = vrot.slane %v1642, %v1646
        %v1657 = vunpack.c.l.b16 %v1634
        %v1658 = vunpack.c.l.b16 %v1635
        %v1659 = vunpack.c.l.b16 %v1636
        %v1660 = vunpack.c.l.b16 %v1637
        %v1661 = vunpack.c.l.b16 %v1638
        %v1662 = vunpack.c.l.b16 %v1639
        %v1663 = vunpack.c.l.b16 %v1640
        %v1664 = vunpack.c.l.b16 %v1641
        %v1665 = vpack.c.b16 %v1658, %v1657
        %v1666 = vpack.c.b16 %v1660, %v1659
        %v1667 = vpack.c.b16 %v1662, %v1661
        %v1668 = vpack.c.b16 %v1664, %v1663
        %vm1673 = vcmask 523264
        %v1675 = vsel %vm1673, %v1633, 0
        %1677 = vmatprep.subr.bf16.mxu0 0
        %1678 = vmatpush1.bf16.msra.mxu0 %v1665
        %1679 = vmatprep.subr.bf16.mxu0 0
        %1680 = vmatpush1.bf16.msra.mxu0 %v1666
        %1681 = vmatprep.subr.bf16.mxu0 0
        %1682 = vmatpush1.bf16.msra.mxu0 %v1667
        %1683 = vmatprep.subr.bf16.mxu0 0
        %1684 = vmatpush1.bf16.msra.mxu0 %v1668
        %1685 = vmatprep.subr.bf16.mxu0 0
        %1686 = vmatpush1.bf16.msra.mxu0 0
        %1687 = vmatprep.subr.bf16.mxu0 0
        %1688 = vmatpush1.bf16.msra.mxu0 0
        %1689 = vmatprep.subr.bf16.mxu0 0
        %1690 = vmatpush1.bf16.msra.mxu0 0
        %1691 = vmatprep.subr.bf16.mxu0 0
        %1692 = vmatpush1.bf16.msra.mxu0 0
        %1693 = vmatprep.subr.bf16.mxu0 0
        %1694 = vmatpush1.bf16.msra.mxu0 0
        %1695 = vmatprep.subr.bf16.mxu0 0
        %1696 = vmatpush1.bf16.msra.mxu0 0
        %1697 = vmatprep.subr.bf16.mxu0 0
        %1698 = vmatpush1.bf16.msra.mxu0 0
        %1699 = vmatprep.subr.bf16.mxu0 0
        %1700 = vmatpush1.bf16.msra.mxu0 0
        %1701 = vmatprep.subr.bf16.mxu0 0
        %1702 = vmatpush1.bf16.msra.mxu0 0
        %1703 = vmatprep.subr.bf16.mxu0 0
        %1704 = vmatpush1.bf16.msra.mxu0 0
        %1705 = vmatprep.subr.bf16.mxu0 0
        %1706 = vmatpush1.bf16.msra.mxu0 0
        %1707 = vmatprep.subr.bf16.mxu0 0
        %1708 = vmatpush1.bf16.msra.mxu0 0
        %1709 = vmatprep.mubr.bf16.mxu0 0
        %1710 = vmatmul.mubr.bf16.gmra.mrb[0].mxu0 %v1675
        %v1711 = vpop.f32.mrb[0].mxu0
        %v1712 = vadd.f32 %v1647, %v1711
        %v1713 = vpop.f32.mrb[0].mxu0
        %v1714 = vpop.f32.mrb[0].mxu0
        %v1715 = vpop.f32.mrb[0].mxu0
        %1716 = vdwg.mxu0
        %v1717 = vadd.f32 %v1712, %v1564
        %v1718 = vsel %vm567, %v1717, 0.0
        %1719 = vadd.xlane.f32.xlu0 %v1718
        %v1720 = vpop.xlane.xlu0 %1719
        %v1721 = vmul.f32 %v1720, %v1538
        %v1722 = vsub.f32 %v1717, %v1721
        %v1723 = vmul.f32 %v1722, %v1722
        %v1724 = vsel %vm567, %v1723, 0.0
        %1725 = vadd.xlane.f32.xlu0 %v1724
        %v1726 = vpop.xlane.xlu0 %1725
        %v1727 = vmul.f32 %v1726, %v1538
        %v1728 = vadd.f32 %v1727, 1e-05
        %v1729 = vrsqrt.pop %v1728
        %v1730 = vmul.f32 %v1722, %v1729
        %v1731 = vld [vmem:[%s11] sm:$0x1]
        %v1733 = vlaneseq
        %v1734 = vshrl.u32 %v1733, 7
        %v1735 = vsub.s32 0, %v1734
        %v1736 = vrot.slane %v1731, %v1735
        %v1738 = vmul.f32 %v1730, %v1736
        %v1739 = vld [vmem:[%s12] sm:$0x1]
        %v1741 = vlaneseq
        %v1742 = vshrl.u32 %v1741, 7
        %v1743 = vsub.s32 0, %v1742
        %v1744 = vrot.slane %v1739, %v1743
        %v1746 = vadd.f32 %v1738, %v1744
        %1747 = vst.msk [vmem:[%s516] sm:$0xff] %vm567, %v1746
        %s1748 = sand.u32 %s344, 1
        %s1749 = scalar_lea.sflag [#allocation3], %s1748
        %s1750 = sand.u32 %s344, 1
        %s1751 = smul.addr %s1750, 8
        %s1752 = scalar_lea.vmem [#allocation2], %s1751
        %s1753 = sand.u32 %s372, 1
        %s1754 = scalar_lea.sflag [#allocation5], %s1753
        %s1755 = sand.u32 %s372, 1
        %s1756 = smul.addr %s1755, 16
        %s1757 = scalar_lea.vmem [#allocation4], %s1756
        // Predicated region
        $region73: #{encoder_layer.1} parent=71 // pred_check
          %p1758 = pneg %p354
        $region74: #{encoder_layer.1} parent=71 // pred_check_branch
          %1760 = sbr.rel (%p1758) target = $region76
        $region75: #{encoder_layer.1} parent=71 // pred_region
          %s1762 = ssub.s32 128, 128
          %1763 = vsyncadd %s1749, %s1762
          %s1764 = sadd.s32 %s37, %s36
          %s1765 = smul.addr %s1764, 128
          %s1766 = scalar_lea.hbm %s13, %s1765
          %s1768 = sshll.u32 %s1752, 4
          %s1769 = int_to_ptr.vmem [resolvable:$true] %s1768
          %1771 = dma.vmem_to_hbm [thread:$0]  %s1769, 128, %s1766, %s1749
        $region76: #{encoder_layer.1} parent=71 // pred_fallthru
          _
        // Predicated region
        $region77: #{encoder_layer.1} parent=71 // pred_check
          %p1772 = pneg %p382
        $region78: #{encoder_layer.1} parent=71 // pred_check_branch
          %1774 = sbr.rel (%p1772) target = $region80
        $region79: #{encoder_layer.1} parent=71 // pred_region
          %s1776 = ssub.s32 256, 256
          %1777 = vsyncadd %s1754, %s1776
          %s1778 = smul.addr %s36, 4
          %s1779 = sadd.s32 %s37, %s1778
          %s1780 = smul.addr %s1779, 64
          %s1781 = scalar_lea.hbm %s14, %s1780
          %s1782 = sshll.u32 %s1757, 4
          %s1783 = int_to_ptr.vmem [resolvable:$true] %s1782
          %1788 = dma.vmem_to_hbm [thread:$0]  %s1783, 256, %s1781, %s1754, 64, 64, 4
        $region80: #{encoder_layer.1} parent=71 // pred_fallthru
          _
      $region72: #{encoder_layer.1} parent=5 // pred_fallthru
        _
      %p1789 = scmp.le.s32.totalorder 2, %s27
      // Predicated region
      $region81: #{encoder_layer.1} parent=5 // pred_check
        %p1790 = pneg %p1789
      $region82: #{encoder_layer.1} parent=5 // pred_check_branch
        %1792 = sbr.rel (%p1790) target = $region84
      $region83: #{encoder_layer.1} parent=5 // pred_region
        %s1793 = ssub.s32 %s27, 2
        // Predicated region
        $region85: #{encoder_layer.1} parent=83 // pred_check
          %p1794 = pneg %p360
        $region86: #{encoder_layer.1} parent=83 // pred_check_branch
          %1796 = sbr.rel (%p1794) target = $region88
        $region87: #{encoder_layer.1} parent=83 // pred_region
          %s1797 = sand.u32 %s345, 1
          %s1798 = scalar_lea.sflag [#allocation3], %s1797
          %s1799 = sand.u32 %s345, 1
          %s1800 = smul.addr %s1799, 8
          %s1801 = scalar_lea.vmem [#allocation2], %s1800
          %1802 = dma.done %s1798, 128
        $region88: #{encoder_layer.1} parent=83 // pred_fallthru
          _
        // Predicated region
        $region89: #{encoder_layer.1} parent=83 // pred_check
          %p1803 = pneg %p388
        $region90: #{encoder_layer.1} parent=83 // pred_check_branch
          %1805 = sbr.rel (%p1803) target = $region92
        $region91: #{encoder_layer.1} parent=83 // pred_region
          %s1806 = sand.u32 %s373, 1
          %s1807 = scalar_lea.sflag [#allocation5], %s1806
          %s1808 = sand.u32 %s373, 1
          %s1809 = smul.addr %s1808, 16
          %s1810 = scalar_lea.vmem [#allocation4], %s1809
          %1811 = dma.done %s1807, 256
        $region92: #{encoder_layer.1} parent=83 // pred_fallthru
          _
      $region84: #{encoder_layer.1} parent=5 // pred_fallthru
        _
    $region6: #{encoder_layer.1} parent=1 // loop_footer
      %s31 = sadd.s32 1, %s27
    $region7: #{encoder_layer.1} parent=1 // loop_footer_branch
      %26 = sbr.rel target = $region3
    $region8: #{encoder_layer.1} parent=1 // loop_exit
      _
    %1812 = vsyncpa [#allocation3], 1
    %s1813 = scalar_lea.sflag [#allocation3], 1
    %1814 = vsyncpa %s1813, 1
    %1815 = vsyncpa [#allocation5], 1
    %s1816 = scalar_lea.sflag [#allocation5], 1
    %1817 = vsyncpa %s1816, 1

</llo_original>
